<compile_context>
chip_gen: v6e
topology: v6e:2x2x1
jax: 0.10.0
libtpu: 0.0.40
codegen_flags: <defaults>
</compile_context>

<pallas_src>
import functools

import jax
import jax.numpy as jnp
from jax.experimental import pallas as pl
from jax.experimental.pallas import tpu as pltpu

LANE = 128


def _pad_to(n, m):
    return ((n + m - 1) // m) * m


def bn_fold(gamma, beta, mean, var, eps=1e-5):
    """Eval-mode BatchNorm -> per-channel (scale, bias)."""
    scale = gamma / jnp.sqrt(var + eps)
    bias = beta - mean * scale
    return scale, bias


# ------------------------------ fused kernel ------------------------------- #

def _bottleneck_kernel(*refs, stride, has_ds, hs, ws, cin, cm, cout):
    """One grid step = one image; everything below runs out of VMEM.

    p_ref holds the zero-padded conv1 output, stored phase-split over the
    conv2 stride so every 3x3 tap is a *contiguous* static window:
        p_ref[q, ii, p, jj, :] == y1_pad[stride*ii + q, stride*jj + p, :]
    """
    if has_ds:
        (x_ref, w1_ref, b1_ref, w2_ref, b2_ref, w3_ref, b3_ref,
         wd_ref, bd_ref, o_ref, p_ref) = refs
    else:
        (x_ref, w1_ref, b1_ref, w2_ref, b2_ref, w3_ref, b3_ref,
         o_ref, p_ref) = refs

    s = stride
    npix = hs * ws
    f32 = jnp.float32

    # Zero the padded scratch once (gives conv2 its zero halo border).
    p_ref[...] = jnp.zeros_like(p_ref)

    # ---- conv1: 1x1 conv (BN scale folded into w1) + bias + ReLU ------------
    # Computed per spatial phase of the (phase-split) input; a 1x1 conv is
    # pointwise, so phase order is irrelevant and the result lands directly in
    # its slot of the phase-split padded scratch with plain static slices.
    w1 = w1_ref[...]
    b1 = b1_ref[...]
    for a in range(s):
        for b in range(s):
            xa = x_ref[0, a, b].reshape(npix, cin)                   # bf16
            y1 = jnp.dot(xa, w1, preferred_element_type=f32) + b1    # f32 acc
            y1 = jnp.maximum(y1, 0.0)
            p_ref[(1 + a) % s,
                  (1 + a) // s:(1 + a) // s + hs,
                  (1 + b) % s,
                  (1 + b) // s:(1 + b) // s + ws, :] = y1.reshape(hs, ws, cm)

    # ---- conv2: 3x3 stride-s conv = 9 accumulating MXU matmuls --------------
    acc = jnp.zeros((npix, cm), f32)
    for dh in range(3):
        for dw in range(3):
            win = p_ref[dh % s, dh // s:dh // s + hs,
                        dw % s, dw // s:dw // s + ws, :]
            win = win.reshape(npix, cm).astype(jnp.bfloat16)
            acc = acc + jnp.dot(win, w2_ref[dh * 3 + dw],
                                preferred_element_type=f32)
    y2 = jnp.maximum(acc + b2_ref[...], 0.0).astype(jnp.bfloat16)

    # ---- conv3: 1x1 conv (BN folded), no ReLU yet ---------------------------
    y3 = jnp.dot(y2, w3_ref[...], preferred_element_type=f32) + b3_ref[...]

    # ---- identity / downsample, residual add, final ReLU --------------------
    if has_ds:
        # x[::s, ::s] is exactly the (0, 0) phase of the resident input block.
        x00 = x_ref[0, 0, 0].reshape(npix, cin)
        idn = jnp.dot(x00, wd_ref[...], preferred_element_type=f32) + bd_ref[...]
    else:
        idn = x_ref[0, 0, 0].reshape(npix, cin).astype(f32)

    o_ref[0] = jnp.maximum(y3 + idn, 0.0).reshape(hs, ws, cout)


# --------------------------- parameter preparation -------------------------- #

def _fold_pad_1x1(w_oihw, bn, cin_p, cout_p):
    """(O, I, 1, 1) torch conv weight -> folded/padded (cin_p, cout_p) bf16 + bias."""
    scale, bias = bn_fold(*bn)
    o, i = w_oihw.shape[0], w_oihw.shape[1]
    w = jnp.transpose(w_oihw[:, :, 0, 0], (1, 0)) * scale[None, :]
    w = jnp.pad(w, ((0, cin_p - i), (0, cout_p - o)))
    b = jnp.pad(bias, (0, cout_p - o)).reshape(1, cout_p)
    return w.astype(jnp.bfloat16), b.astype(jnp.float32)


def _fold_pad_3x3(w_oihw, bn, cin_p, cout_p):
    """(O, I, 3, 3) -> folded/padded (9, cin_p, cout_p) bf16 (tap = kh*3+kw) + bias."""
    scale, bias = bn_fold(*bn)
    o, i = w_oihw.shape[0], w_oihw.shape[1]
    w = jnp.transpose(w_oihw, (2, 3, 1, 0)).reshape(9, i, o) * scale[None, None, :]
    w = jnp.pad(w, ((0, 0), (0, cin_p - i), (0, cout_p - o)))
    b = jnp.pad(bias, (0, cout_p - o)).reshape(1, cout_p)
    return w.astype(jnp.bfloat16), b.astype(jnp.float32)


def init_bottleneck_params(key, in_channels, out_channels, stride, expansion=4):
    channels = out_channels // expansion
    ks = jax.random.split(key, 8)

    def bn_params(k, c):
        k1, k2, k3, k4 = jax.random.split(k, 4)
        gamma = 1.0 + 0.1 * jax.random.normal(k1, (c,), jnp.float32)
        beta = 0.1 * jax.random.normal(k2, (c,), jnp.float32)
        mean = 0.05 * jax.random.normal(k3, (c,), jnp.float32)
        var = 1.0 + 0.1 * jnp.abs(jax.random.normal(k4, (c,), jnp.float32))
        return (gamma, beta, mean, var)

    params = {
        'w1': 0.1 * jax.random.normal(ks[0], (channels, in_channels, 1, 1), jnp.float32),
        'bn1': bn_params(ks[3], channels),
        'w2': 0.1 * jax.random.normal(ks[1], (channels, channels, 3, 3), jnp.float32),
        'bn2': bn_params(ks[4], channels),
        'w3': 0.1 * jax.random.normal(ks[2], (out_channels, channels, 1, 1), jnp.float32),
        'bn3': bn_params(ks[5], out_channels),
        'wd': None,
        'bnd': None,
    }
    if stride != 1 or in_channels != out_channels:
        params['wd'] = 0.1 * jax.random.normal(
            ks[6], (out_channels, in_channels, 1, 1), jnp.float32)
        params['bnd'] = bn_params(ks[7], out_channels)
    return params


# --------------------------------- forward ---------------------------------- #

def bottleneck_forward(x_nchw, params, stride):
    N, Cin, H, W = x_nchw.shape
    Cout, Cm = params['w3'].shape[0], params['w3'].shape[1]
    assert H % stride == 0 and W % stride == 0
    hs, ws = H // stride, W // stride

    cin_p = _pad_to(Cin, LANE)
    cm_p = _pad_to(Cm, LANE)
    cout_p = _pad_to(Cout, LANE)

    # Layout plumbing (host side): NCHW -> NHWC, pad channels to 128 lanes,
    # phase-split the spatial dims over the stride so the kernel never needs a
    # strided read (the downsample phase is X[:, 0, 0]).  bf16 halves HBM bytes.
    x = jnp.transpose(x_nchw, (0, 2, 3, 1)).astype(jnp.float32)
    x = jnp.pad(x, ((0, 0), (0, 0), (0, 0), (0, cin_p - Cin)))
    x6 = x.reshape(N, hs, stride, ws, stride, cin_p).transpose(0, 2, 4, 1, 3, 5)
    x6 = x6.astype(jnp.bfloat16)

    w1, b1 = _fold_pad_1x1(params['w1'], params['bn1'], cin_p, cm_p)
    w2, b2 = _fold_pad_3x3(params['w2'], params['bn2'], cm_p, cm_p)
    w3, b3 = _fold_pad_1x1(params['w3'], params['bn3'], cm_p, cout_p)

    has_ds = params['wd'] is not None
    if not has_ds:
        assert stride == 1 and cin_p == cout_p

    inputs = [x6, w1, b1, w2, b2, w3, b3]
    in_specs = [
        pl.BlockSpec((1, stride, stride, hs, ws, cin_p),
                     lambda n: (n, 0, 0, 0, 0, 0)),
        pl.BlockSpec((cin_p, cm_p), lambda n: (0, 0)),
        pl.BlockSpec((1, cm_p), lambda n: (0, 0)),
        pl.BlockSpec((9, cm_p, cm_p), lambda n: (0, 0, 0)),
        pl.BlockSpec((1, cm_p), lambda n: (0, 0)),
        pl.BlockSpec((cm_p, cout_p), lambda n: (0, 0)),
        pl.BlockSpec((1, cout_p), lambda n: (0, 0)),
    ]
    if has_ds:
        wd, bd = _fold_pad_1x1(params['wd'], params['bnd'], cin_p, cout_p)
        inputs += [wd, bd]
        in_specs += [pl.BlockSpec((cin_p, cout_p), lambda n: (0, 0)),
                     pl.BlockSpec((1, cout_p), lambda n: (0, 0))]

    # Padded, phase-split conv1 output scratch (covers the 3x3 halo).
    hh = -(-(hs * stride + 2) // stride)
    wh = -(-(ws * stride + 2) // stride)

    kernel = functools.partial(
        _bottleneck_kernel, stride=stride, has_ds=has_ds,
        hs=hs, ws=ws, cin=cin_p, cm=cm_p, cout=cout_p)

    flops = 2 * N * hs * ws * (cin_p * cm_p + 9 * cm_p * cm_p + cm_p * cout_p
                               + (cin_p * cout_p if has_ds else 0))
    bytes_accessed = (sum(int(a.size) * a.dtype.itemsize for a in inputs)
                      + N * hs * ws * cout_p * 4)

    out = pl.pallas_call(
        kernel,
        out_shape=jax.ShapeDtypeStruct((N, hs, ws, cout_p), jnp.float32),
        grid_spec=pltpu.PrefetchScalarGridSpec(
            num_scalar_prefetch=0,
            grid=(N,),
            in_specs=in_specs,
            out_specs=pl.BlockSpec((1, hs, ws, cout_p), lambda n: (n, 0, 0, 0)),
            scratch_shapes=[
                pltpu.VMEM((stride, hh, stride, wh, cm_p), jnp.float32)],
        ),
        compiler_params=pltpu.CompilerParams(
            dimension_semantics=("parallel",),      # shards batch across TCs on v7x
            vmem_limit_bytes=48 * 1024 * 1024,      # explicit; < v7x 64 MiB physical
        ),
        cost_estimate=pl.CostEstimate(
            flops=int(flops), transcendentals=0,
            bytes_accessed=int(bytes_accessed)),
    )(*inputs)

    out = out[..., :Cout]                            # drop channel padding
    return jnp.transpose(out, (0, 3, 1, 2))          # back to NCHW


# ----------------------------- pure-JAX reference --------------------------- #

def _conv2d_ref(x_nhwc, w_oihw, stride, padding):
    w_hwio = jnp.transpose(w_oihw, (2, 3, 1, 0))
    return jax.lax.conv_general_dilated(
        x_nhwc, w_hwio, window_strides=(stride, stride),
        padding=[(padding, padding), (padding, padding)],
        dimension_numbers=('NHWC', 'HWIO', 'NHWC'))


def _bn_ref(x, bn, eps=1e-5):
    gamma, beta, mean, var = bn
    return (x - mean) / jnp.sqrt(var + eps) * gamma + beta


def bottleneck_reference(x_nchw, params, stride):
    x = jnp.transpose(x_nchw, (0, 2, 3, 1)).astype(jnp.float32)
    y = jax.nn.relu(_bn_ref(_conv2d_ref(x, params['w1'], 1, 0), params['bn1']))
    y = jax.nn.relu(_bn_ref(_conv2d_ref(y, params['w2'], stride, 1), params['bn2']))
    y = _bn_ref(_conv2d_ref(y, params['w3'], 1, 0), params['bn3'])
    if params['wd'] is not None:
        idn = _bn_ref(_conv2d_ref(x, params['wd'], stride, 0), params['bnd'])
    else:
        idn = x
    return jnp.transpose(jax.nn.relu(y + idn), (0, 3, 1, 2))


# ------------------------------------ main ----------------------------------- #

if __name__ == "__main__":
    key = jax.random.PRNGKey(0)
    k_x, k_p = jax.random.split(key)

    batch, in_channels, spatial = 2, 8, 16
    out_channels, stride, expansion = 16, 2, 4

    x = jax.random.normal(k_x, (batch, in_channels, spatial, spatial), jnp.float32)
    params = init_bottleneck_params(k_p, in_channels, out_channels, stride, expansion)

    fwd = jax.jit(functools.partial(bottleneck_forward, stride=stride))
    out = jax.block_until_ready(fwd(x, params))

    expected_shape = (batch, out_channels, spatial // stride, spatial // stride)
    assert out.shape == expected_shape, (out.shape, expected_shape)
    assert bool(jnp.all(out >= 0.0))                 # final ReLU

    ref = bottleneck_reference(x, params, stride)
    max_err = float(jnp.max(jnp.abs(out - ref)))
    assert max_err < 5e-2, f"max abs error vs f32 reference: {max_err}"

    print("KERNEL_OK")
</pallas_src>

<mosaic_0001>
module attributes {stable_mosaic.version = 11 : i64} {
  func.func @_bottleneck_kernel(%arg0: i32, %arg1: memref<1x2x2x8x8x128xbf16, #tpu.memory_space<vmem>>, %arg2: memref<128x128xbf16, #tpu.memory_space<vmem>>, %arg3: memref<1x128xf32, #tpu.memory_space<vmem>>, %arg4: memref<9x128x128xbf16, #tpu.memory_space<vmem>>, %arg5: memref<1x128xf32, #tpu.memory_space<vmem>>, %arg6: memref<128x128xbf16, #tpu.memory_space<vmem>>, %arg7: memref<1x128xf32, #tpu.memory_space<vmem>>, %arg8: memref<128x128xbf16, #tpu.memory_space<vmem>>, %arg9: memref<1x128xf32, #tpu.memory_space<vmem>>, %arg10: memref<1x8x8x128xf32, #tpu.memory_space<vmem>>, %arg11: memref<2x9x2x9x128xf32, #tpu.memory_space<vmem>>) attributes {dimension_semantics = [#tpu.dimension_semantics<parallel>], iteration_bounds = array<i64: 2>, scalar_prefetch = 0 : i64, scratch_operands = 1 : i64, tpu.core_type = #tpu.core_type<tc>, window_params = [{transform_indices = @transform_0, window_bounds = array<i64: 1, 2, 2, 8, 8, 128>}, {pipeline_mode = #tpu.pipeline_mode<synchronous>, transform_indices = @transform_1, window_bounds = array<i64: 128, 128>}, {pipeline_mode = #tpu.pipeline_mode<synchronous>, transform_indices = @transform_2, window_bounds = array<i64: 1, 128>}, {pipeline_mode = #tpu.pipeline_mode<synchronous>, transform_indices = @transform_3, window_bounds = array<i64: 9, 128, 128>}, {pipeline_mode = #tpu.pipeline_mode<synchronous>, transform_indices = @transform_4, window_bounds = array<i64: 1, 128>}, {pipeline_mode = #tpu.pipeline_mode<synchronous>, transform_indices = @transform_5, window_bounds = array<i64: 128, 128>}, {pipeline_mode = #tpu.pipeline_mode<synchronous>, transform_indices = @transform_6, window_bounds = array<i64: 1, 128>}, {pipeline_mode = #tpu.pipeline_mode<synchronous>, transform_indices = @transform_7, window_bounds = array<i64: 128, 128>}, {pipeline_mode = #tpu.pipeline_mode<synchronous>, transform_indices = @transform_8, window_bounds = array<i64: 1, 128>}, {transform_indices = @transform_9, window_bounds = array<i64: 1, 8, 8, 128>}]} {
    %cst = arith.constant 0.000000e+00 : f32
    %0 = vector.broadcast %cst : f32 to vector<2x9x2x9x128xf32>
    %c0 = arith.constant 0 : index
    %c0_0 = arith.constant 0 : index
    %c0_1 = arith.constant 0 : index
    %c0_2 = arith.constant 0 : index
    %c0_3 = arith.constant 0 : index
    %1 = vector.load %arg11[%c0, %c0_0, %c0_1, %c0_2, %c0_3] : memref<2x9x2x9x128xf32, #tpu.memory_space<vmem>>, vector<2x9x2x9x128xf32>
    tpu.vector_store %arg11[%c0, %c0_0, %c0_1, %c0_2, %c0_3], %0 {strides = array<i32>} : memref<2x9x2x9x128xf32, #tpu.memory_space<vmem>>, vector<2x9x2x9x128xf32>,
    %c0_4 = arith.constant 0 : index
    %c0_5 = arith.constant 0 : index
    %2 = vector.load %arg2[%c0_4, %c0_5] : memref<128x128xbf16, #tpu.memory_space<vmem>>, vector<128x128xbf16>
    %c0_6 = arith.constant 0 : index
    %c0_7 = arith.constant 0 : index
    %3 = vector.load %arg3[%c0_6, %c0_7] : memref<1x128xf32, #tpu.memory_space<vmem>>, vector<1x128xf32>
    %c0_8 = arith.constant 0 : index
    %c0_9 = arith.constant 0 : index
    %c0_10 = arith.constant 0 : index
    %c0_11 = arith.constant 0 : index
    %c0_12 = arith.constant 0 : index
    %c0_13 = arith.constant 0 : index
    %4 = vector.load %arg1[%c0_8, %c0_9, %c0_10, %c0_11, %c0_12, %c0_13] : memref<1x2x2x8x8x128xbf16, #tpu.memory_space<vmem>>, vector<1x1x1x8x8x128xbf16>
    %5 = vector.shape_cast %4 : vector<1x1x1x8x8x128xbf16> to vector<8x8x128xbf16>
    %6 = vector.shape_cast %5 : vector<8x8x128xbf16> to vector<64x128xbf16>
    %cst_14 = arith.constant dense<0.000000e+00> : vector<64x128xf32>
    %7 = tpu.matmul %6, %2, %cst_14 {dimension_numbers = #tpu.dot_dimension_numbers<[1], [0], [0], [1], [0, 0, 1, 1], [], []>} : vector<64x128xbf16>, vector<128x128xbf16>, vector<64x128xf32> -> vector<64x128xf32>
    %8 = vector.broadcast %3 : vector<1x128xf32> to vector<64x128xf32>
    %9 = arith.addf %7, %8 : vector<64x128xf32>
    %cst_15 = arith.constant 0.000000e+00 : f32
    %10 = vector.broadcast %cst_15 : f32 to vector<64x128xf32>
    %11 = arith.maximumf %9, %10 : vector<64x128xf32>
    %12 = vector.shape_cast %11 : vector<64x128xf32> to vector<8x8x128xf32>
    %c1 = arith.constant 1 : index
    %c0_16 = arith.constant 0 : index
    %c1_17 = arith.constant 1 : index
    %c0_18 = arith.constant 0 : index
    %c0_19 = arith.constant 0 : index
    %13 = vector.load %arg11[%c1, %c0_16, %c1_17, %c0_18, %c0_19] : memref<2x9x2x9x128xf32, #tpu.memory_space<vmem>>, vector<1x8x1x8x128xf32>
    %14 = vector.shape_cast %13 : vector<1x8x1x8x128xf32> to vector<8x8x128xf32>
    %15 = vector.shape_cast %12 : vector<8x8x128xf32> to vector<1x8x1x8x128xf32>
    tpu.vector_store %arg11[%c1, %c0_16, %c1_17, %c0_18, %c0_19], %15 {strides = array<i32>} : memref<2x9x2x9x128xf32, #tpu.memory_space<vmem>>, vector<1x8x1x8x128xf32>,
    %c0_20 = arith.constant 0 : index
    %c0_21 = arith.constant 0 : index
    %c1_22 = arith.constant 1 : index
    %c0_23 = arith.constant 0 : index
    %c0_24 = arith.constant 0 : index
    %c0_25 = arith.constant 0 : index
    %16 = vector.load %arg1[%c0_20, %c0_21, %c1_22, %c0_23, %c0_24, %c0_25] : memref<1x2x2x8x8x128xbf16, #tpu.memory_space<vmem>>, vector<1x1x1x8x8x128xbf16>
    %17 = vector.shape_cast %16 : vector<1x1x1x8x8x128xbf16> to vector<8x8x128xbf16>
    %18 = vector.shape_cast %17 : vector<8x8x128xbf16> to vector<64x128xbf16>
    %cst_26 = arith.constant dense<0.000000e+00> : vector<64x128xf32>
    %19 = tpu.matmul %18, %2, %cst_26 {dimension_numbers = #tpu.dot_dimension_numbers<[1], [0], [0], [1], [0, 0, 1, 1], [], []>} : vector<64x128xbf16>, vector<128x128xbf16>, vector<64x128xf32> -> vector<64x128xf32>
    %20 = vector.broadcast %3 : vector<1x128xf32> to vector<64x128xf32>
    %21 = arith.addf %19, %20 : vector<64x128xf32>
    %cst_27 = arith.constant 0.000000e+00 : f32
    %22 = vector.broadcast %cst_27 : f32 to vector<64x128xf32>
    %23 = arith.maximumf %21, %22 : vector<64x128xf32>
    %24 = vector.shape_cast %23 : vector<64x128xf32> to vector<8x8x128xf32>
    %c1_28 = arith.constant 1 : index
    %c0_29 = arith.constant 0 : index
    %c0_30 = arith.constant 0 : index
    %c1_31 = arith.constant 1 : index
    %c0_32 = arith.constant 0 : index
    %25 = vector.load %arg11[%c1_28, %c0_29, %c0_30, %c1_31, %c0_32] : memref<2x9x2x9x128xf32, #tpu.memory_space<vmem>>, vector<1x8x1x8x128xf32>
    %26 = vector.shape_cast %25 : vector<1x8x1x8x128xf32> to vector<8x8x128xf32>
    %27 = vector.shape_cast %24 : vector<8x8x128xf32> to vector<1x8x1x8x128xf32>
    tpu.vector_store %arg11[%c1_28, %c0_29, %c0_30, %c1_31, %c0_32], %27 {strides = array<i32>} : memref<2x9x2x9x128xf32, #tpu.memory_space<vmem>>, vector<1x8x1x8x128xf32>,
    %c0_33 = arith.constant 0 : index
    %c1_34 = arith.constant 1 : index
    %c0_35 = arith.constant 0 : index
    %c0_36 = arith.constant 0 : index
    %c0_37 = arith.constant 0 : index
    %c0_38 = arith.constant 0 : index
    %28 = vector.load %arg1[%c0_33, %c1_34, %c0_35, %c0_36, %c0_37, %c0_38] : memref<1x2x2x8x8x128xbf16, #tpu.memory_space<vmem>>, vector<1x1x1x8x8x128xbf16>
    %29 = vector.shape_cast %28 : vector<1x1x1x8x8x128xbf16> to vector<8x8x128xbf16>
    %30 = vector.shape_cast %29 : vector<8x8x128xbf16> to vector<64x128xbf16>
    %cst_39 = arith.constant dense<0.000000e+00> : vector<64x128xf32>
    %31 = tpu.matmul %30, %2, %cst_39 {dimension_numbers = #tpu.dot_dimension_numbers<[1], [0], [0], [1], [0, 0, 1, 1], [], []>} : vector<64x128xbf16>, vector<128x128xbf16>, vector<64x128xf32> -> vector<64x128xf32>
    %32 = vector.broadcast %3 : vector<1x128xf32> to vector<64x128xf32>
    %33 = arith.addf %31, %32 : vector<64x128xf32>
    %cst_40 = arith.constant 0.000000e+00 : f32
    %34 = vector.broadcast %cst_40 : f32 to vector<64x128xf32>
    %35 = arith.maximumf %33, %34 : vector<64x128xf32>
    %36 = vector.shape_cast %35 : vector<64x128xf32> to vector<8x8x128xf32>
    %c0_41 = arith.constant 0 : index
    %c1_42 = arith.constant 1 : index
    %c1_43 = arith.constant 1 : index
    %c0_44 = arith.constant 0 : index
    %c0_45 = arith.constant 0 : index
    %37 = vector.load %arg11[%c0_41, %c1_42, %c1_43, %c0_44, %c0_45] : memref<2x9x2x9x128xf32, #tpu.memory_space<vmem>>, vector<1x8x1x8x128xf32>
    %38 = vector.shape_cast %37 : vector<1x8x1x8x128xf32> to vector<8x8x128xf32>
    %39 = vector.shape_cast %36 : vector<8x8x128xf32> to vector<1x8x1x8x128xf32>
    tpu.vector_store %arg11[%c0_41, %c1_42, %c1_43, %c0_44, %c0_45], %39 {strides = array<i32>} : memref<2x9x2x9x128xf32, #tpu.memory_space<vmem>>, vector<1x8x1x8x128xf32>,
    %c0_46 = arith.constant 0 : index
    %c1_47 = arith.constant 1 : index
    %c1_48 = arith.constant 1 : index
    %c0_49 = arith.constant 0 : index
    %c0_50 = arith.constant 0 : index
    %c0_51 = arith.constant 0 : index
    %40 = vector.load %arg1[%c0_46, %c1_47, %c1_48, %c0_49, %c0_50, %c0_51] : memref<1x2x2x8x8x128xbf16, #tpu.memory_space<vmem>>, vector<1x1x1x8x8x128xbf16>
    %41 = vector.shape_cast %40 : vector<1x1x1x8x8x128xbf16> to vector<8x8x128xbf16>
    %42 = vector.shape_cast %41 : vector<8x8x128xbf16> to vector<64x128xbf16>
    %cst_52 = arith.constant dense<0.000000e+00> : vector<64x128xf32>
    %43 = tpu.matmul %42, %2, %cst_52 {dimension_numbers = #tpu.dot_dimension_numbers<[1], [0], [0], [1], [0, 0, 1, 1], [], []>} : vector<64x128xbf16>, vector<128x128xbf16>, vector<64x128xf32> -> vector<64x128xf32>
    %44 = vector.broadcast %3 : vector<1x128xf32> to vector<64x128xf32>
    %45 = arith.addf %43, %44 : vector<64x128xf32>
    %cst_53 = arith.constant 0.000000e+00 : f32
    %46 = vector.broadcast %cst_53 : f32 to vector<64x128xf32>
    %47 = arith.maximumf %45, %46 : vector<64x128xf32>
    %48 = vector.shape_cast %47 : vector<64x128xf32> to vector<8x8x128xf32>
    %c0_54 = arith.constant 0 : index
    %c1_55 = arith.constant 1 : index
    %c0_56 = arith.constant 0 : index
    %c1_57 = arith.constant 1 : index
    %c0_58 = arith.constant 0 : index
    %49 = vector.load %arg11[%c0_54, %c1_55, %c0_56, %c1_57, %c0_58] : memref<2x9x2x9x128xf32, #tpu.memory_space<vmem>>, vector<1x8x1x8x128xf32>
    %50 = vector.shape_cast %49 : vector<1x8x1x8x128xf32> to vector<8x8x128xf32>
    %51 = vector.shape_cast %48 : vector<8x8x128xf32> to vector<1x8x1x8x128xf32>
    tpu.vector_store %arg11[%c0_54, %c1_55, %c0_56, %c1_57, %c0_58], %51 {strides = array<i32>} : memref<2x9x2x9x128xf32, #tpu.memory_space<vmem>>, vector<1x8x1x8x128xf32>,
    %cst_59 = arith.constant 0.000000e+00 : f32
    %52 = vector.broadcast %cst_59 : f32 to vector<64x128xf32>
    %c0_60 = arith.constant 0 : index
    %c0_61 = arith.constant 0 : index
    %c0_62 = arith.constant 0 : index
    %c0_63 = arith.constant 0 : index
    %c0_64 = arith.constant 0 : index
    %53 = vector.load %arg11[%c0_60, %c0_61, %c0_62, %c0_63, %c0_64] : memref<2x9x2x9x128xf32, #tpu.memory_space<vmem>>, vector<1x8x1x8x128xf32>
    %54 = vector.shape_cast %53 : vector<1x8x1x8x128xf32> to vector<8x8x128xf32>
    %55 = vector.shape_cast %54 : vector<8x8x128xf32> to vector<64x128xf32>
    %56 = arith.truncf %55 : vector<64x128xf32> to vector<64x128xbf16>
    %c0_65 = arith.constant 0 : index
    %c0_66 = arith.constant 0 : index
    %c0_67 = arith.constant 0 : index
    %57 = vector.load %arg4[%c0_65, %c0_66, %c0_67] : memref<9x128x128xbf16, #tpu.memory_space<vmem>>, vector<1x128x128xbf16>
    %58 = vector.shape_cast %57 : vector<1x128x128xbf16> to vector<128x128xbf16>
    %cst_68 = arith.constant dense<0.000000e+00> : vector<64x128xf32>
    %59 = tpu.matmul %56, %58, %cst_68 {dimension_numbers = #tpu.dot_dimension_numbers<[1], [0], [0], [1], [0, 0, 1, 1], [], []>} : vector<64x128xbf16>, vector<128x128xbf16>, vector<64x128xf32> -> vector<64x128xf32>
    %60 = arith.addf %52, %59 : vector<64x128xf32>
    %c0_69 = arith.constant 0 : index
    %c0_70 = arith.constant 0 : index
    %c1_71 = arith.constant 1 : index
    %c0_72 = arith.constant 0 : index
    %c0_73 = arith.constant 0 : index
    %61 = vector.load %arg11[%c0_69, %c0_70, %c1_71, %c0_72, %c0_73] : memref<2x9x2x9x128xf32, #tpu.memory_space<vmem>>, vector<1x8x1x8x128xf32>
    %62 = vector.shape_cast %61 : vector<1x8x1x8x128xf32> to vector<8x8x128xf32>
    %63 = vector.shape_cast %62 : vector<8x8x128xf32> to vector<64x128xf32>
    %64 = arith.truncf %63 : vector<64x128xf32> to vector<64x128xbf16>
    %c1_74 = arith.constant 1 : index
    %c0_75 = arith.constant 0 : index
    %c0_76 = arith.constant 0 : index
    %65 = vector.load %arg4[%c1_74, %c0_75, %c0_76] : memref<9x128x128xbf16, #tpu.memory_space<vmem>>, vector<1x128x128xbf16>
    %66 = vector.shape_cast %65 : vector<1x128x128xbf16> to vector<128x128xbf16>
    %cst_77 = arith.constant dense<0.000000e+00> : vector<64x128xf32>
    %67 = tpu.matmul %64, %66, %cst_77 {dimension_numbers = #tpu.dot_dimension_numbers<[1], [0], [0], [1], [0, 0, 1, 1], [], []>} : vector<64x128xbf16>, vector<128x128xbf16>, vector<64x128xf32> -> vector<64x128xf32>
    %68 = arith.addf %60, %67 : vector<64x128xf32>
    %c0_78 = arith.constant 0 : index
    %c0_79 = arith.constant 0 : index
    %c0_80 = arith.constant 0 : index
    %c1_81 = arith.constant 1 : index
    %c0_82 = arith.constant 0 : index
    %69 = vector.load %arg11[%c0_78, %c0_79, %c0_80, %c1_81, %c0_82] : memref<2x9x2x9x128xf32, #tpu.memory_space<vmem>>, vector<1x8x1x8x128xf32>
    %70 = vector.shape_cast %69 : vector<1x8x1x8x128xf32> to vector<8x8x128xf32>
    %71 = vector.shape_cast %70 : vector<8x8x128xf32> to vector<64x128xf32>
    %72 = arith.truncf %71 : vector<64x128xf32> to vector<64x128xbf16>
    %c2 = arith.constant 2 : index
    %c0_83 = arith.constant 0 : index
    %c0_84 = arith.constant 0 : index
    %73 = vector.load %arg4[%c2, %c0_83, %c0_84] : memref<9x128x128xbf16, #tpu.memory_space<vmem>>, vector<1x128x128xbf16>
    %74 = vector.shape_cast %73 : vector<1x128x128xbf16> to vector<128x128xbf16>
    %cst_85 = arith.constant dense<0.000000e+00> : vector<64x128xf32>
    %75 = tpu.matmul %72, %74, %cst_85 {dimension_numbers = #tpu.dot_dimension_numbers<[1], [0], [0], [1], [0, 0, 1, 1], [], []>} : vector<64x128xbf16>, vector<128x128xbf16>, vector<64x128xf32> -> vector<64x128xf32>
    %76 = arith.addf %68, %75 : vector<64x128xf32>
    %c1_86 = arith.constant 1 : index
    %c0_87 = arith.constant 0 : index
    %c0_88 = arith.constant 0 : index
    %c0_89 = arith.constant 0 : index
    %c0_90 = arith.constant 0 : index
    %77 = vector.load %arg11[%c1_86, %c0_87, %c0_88, %c0_89, %c0_90] : memref<2x9x2x9x128xf32, #tpu.memory_space<vmem>>, vector<1x8x1x8x128xf32>
    %78 = vector.shape_cast %77 : vector<1x8x1x8x128xf32> to vector<8x8x128xf32>
    %79 = vector.shape_cast %78 : vector<8x8x128xf32> to vector<64x128xf32>
    %80 = arith.truncf %79 : vector<64x128xf32> to vector<64x128xbf16>
    %c3 = arith.constant 3 : index
    %c0_91 = arith.constant 0 : index
    %c0_92 = arith.constant 0 : index
    %81 = vector.load %arg4[%c3, %c0_91, %c0_92] : memref<9x128x128xbf16, #tpu.memory_space<vmem>>, vector<1x128x128xbf16>
    %82 = vector.shape_cast %81 : vector<1x128x128xbf16> to vector<128x128xbf16>
    %cst_93 = arith.constant dense<0.000000e+00> : vector<64x128xf32>
    %83 = tpu.matmul %80, %82, %cst_93 {dimension_numbers = #tpu.dot_dimension_numbers<[1], [0], [0], [1], [0, 0, 1, 1], [], []>} : vector<64x128xbf16>, vector<128x128xbf16>, vector<64x128xf32> -> vector<64x128xf32>
    %84 = arith.addf %76, %83 : vector<64x128xf32>
    %c1_94 = arith.constant 1 : index
    %c0_95 = arith.constant 0 : index
    %c1_96 = arith.constant 1 : index
    %c0_97 = arith.constant 0 : index
    %c0_98 = arith.constant 0 : index
    %85 = vector.load %arg11[%c1_94, %c0_95, %c1_96, %c0_97, %c0_98] : memref<2x9x2x9x128xf32, #tpu.memory_space<vmem>>, vector<1x8x1x8x128xf32>
    %86 = vector.shape_cast %85 : vector<1x8x1x8x128xf32> to vector<8x8x128xf32>
    %87 = vector.shape_cast %86 : vector<8x8x128xf32> to vector<64x128xf32>
    %88 = arith.truncf %87 : vector<64x128xf32> to vector<64x128xbf16>
    %c4 = arith.constant 4 : index
    %c0_99 = arith.constant 0 : index
    %c0_100 = arith.constant 0 : index
    %89 = vector.load %arg4[%c4, %c0_99, %c0_100] : memref<9x128x128xbf16, #tpu.memory_space<vmem>>, vector<1x128x128xbf16>
    %90 = vector.shape_cast %89 : vector<1x128x128xbf16> to vector<128x128xbf16>
    %cst_101 = arith.constant dense<0.000000e+00> : vector<64x128xf32>
    %91 = tpu.matmul %88, %90, %cst_101 {dimension_numbers = #tpu.dot_dimension_numbers<[1], [0], [0], [1], [0, 0, 1, 1], [], []>} : vector<64x128xbf16>, vector<128x128xbf16>, vector<64x128xf32> -> vector<64x128xf32>
    %92 = arith.addf %84, %91 : vector<64x128xf32>
    %c1_102 = arith.constant 1 : index
    %c0_103 = arith.constant 0 : index
    %c0_104 = arith.constant 0 : index
    %c1_105 = arith.constant 1 : index
    %c0_106 = arith.constant 0 : index
    %93 = vector.load %arg11[%c1_102, %c0_103, %c0_104, %c1_105, %c0_106] : memref<2x9x2x9x128xf32, #tpu.memory_space<vmem>>, vector<1x8x1x8x128xf32>
    %94 = vector.shape_cast %93 : vector<1x8x1x8x128xf32> to vector<8x8x128xf32>
    %95 = vector.shape_cast %94 : vector<8x8x128xf32> to vector<64x128xf32>
    %96 = arith.truncf %95 : vector<64x128xf32> to vector<64x128xbf16>
    %c5 = arith.constant 5 : index
    %c0_107 = arith.constant 0 : index
    %c0_108 = arith.constant 0 : index
    %97 = vector.load %arg4[%c5, %c0_107, %c0_108] : memref<9x128x128xbf16, #tpu.memory_space<vmem>>, vector<1x128x128xbf16>
    %98 = vector.shape_cast %97 : vector<1x128x128xbf16> to vector<128x128xbf16>
    %cst_109 = arith.constant dense<0.000000e+00> : vector<64x128xf32>
    %99 = tpu.matmul %96, %98, %cst_109 {dimension_numbers = #tpu.dot_dimension_numbers<[1], [0], [0], [1], [0, 0, 1, 1], [], []>} : vector<64x128xbf16>, vector<128x128xbf16>, vector<64x128xf32> -> vector<64x128xf32>
    %100 = arith.addf %92, %99 : vector<64x128xf32>
    %c0_110 = arith.constant 0 : index
    %c1_111 = arith.constant 1 : index
    %c0_112 = arith.constant 0 : index
    %c0_113 = arith.constant 0 : index
    %c0_114 = arith.constant 0 : index
    %101 = vector.load %arg11[%c0_110, %c1_111, %c0_112, %c0_113, %c0_114] : memref<2x9x2x9x128xf32, #tpu.memory_space<vmem>>, vector<1x8x1x8x128xf32>
    %102 = vector.shape_cast %101 : vector<1x8x1x8x128xf32> to vector<8x8x128xf32>
    %103 = vector.shape_cast %102 : vector<8x8x128xf32> to vector<64x128xf32>
    %104 = arith.truncf %103 : vector<64x128xf32> to vector<64x128xbf16>
    %c6 = arith.constant 6 : index
    %c0_115 = arith.constant 0 : index
    %c0_116 = arith.constant 0 : index
    %105 = vector.load %arg4[%c6, %c0_115, %c0_116] : memref<9x128x128xbf16, #tpu.memory_space<vmem>>, vector<1x128x128xbf16>
    %106 = vector.shape_cast %105 : vector<1x128x128xbf16> to vector<128x128xbf16>
    %cst_117 = arith.constant dense<0.000000e+00> : vector<64x128xf32>
    %107 = tpu.matmul %104, %106, %cst_117 {dimension_numbers = #tpu.dot_dimension_numbers<[1], [0], [0], [1], [0, 0, 1, 1], [], []>} : vector<64x128xbf16>, vector<128x128xbf16>, vector<64x128xf32> -> vector<64x128xf32>
    %108 = arith.addf %100, %107 : vector<64x128xf32>
    %c0_118 = arith.constant 0 : index
    %c1_119 = arith.constant 1 : index
    %c1_120 = arith.constant 1 : index
    %c0_121 = arith.constant 0 : index
    %c0_122 = arith.constant 0 : index
    %109 = vector.load %arg11[%c0_118, %c1_119, %c1_120, %c0_121, %c0_122] : memref<2x9x2x9x128xf32, #tpu.memory_space<vmem>>, vector<1x8x1x8x128xf32>
    %110 = vector.shape_cast %109 : vector<1x8x1x8x128xf32> to vector<8x8x128xf32>
    %111 = vector.shape_cast %110 : vector<8x8x128xf32> to vector<64x128xf32>
    %112 = arith.truncf %111 : vector<64x128xf32> to vector<64x128xbf16>
    %c7 = arith.constant 7 : index
    %c0_123 = arith.constant 0 : index
    %c0_124 = arith.constant 0 : index
    %113 = vector.load %arg4[%c7, %c0_123, %c0_124] : memref<9x128x128xbf16, #tpu.memory_space<vmem>>, vector<1x128x128xbf16>
    %114 = vector.shape_cast %113 : vector<1x128x128xbf16> to vector<128x128xbf16>
    %cst_125 = arith.constant dense<0.000000e+00> : vector<64x128xf32>
    %115 = tpu.matmul %112, %114, %cst_125 {dimension_numbers = #tpu.dot_dimension_numbers<[1], [0], [0], [1], [0, 0, 1, 1], [], []>} : vector<64x128xbf16>, vector<128x128xbf16>, vector<64x128xf32> -> vector<64x128xf32>
    %116 = arith.addf %108, %115 : vector<64x128xf32>
    %c0_126 = arith.constant 0 : index
    %c1_127 = arith.constant 1 : index
    %c0_128 = arith.constant 0 : index
    %c1_129 = arith.constant 1 : index
    %c0_130 = arith.constant 0 : index
    %117 = vector.load %arg11[%c0_126, %c1_127, %c0_128, %c1_129, %c0_130] : memref<2x9x2x9x128xf32, #tpu.memory_space<vmem>>, vector<1x8x1x8x128xf32>
    %118 = vector.shape_cast %117 : vector<1x8x1x8x128xf32> to vector<8x8x128xf32>
    %119 = vector.shape_cast %118 : vector<8x8x128xf32> to vector<64x128xf32>
    %120 = arith.truncf %119 : vector<64x128xf32> to vector<64x128xbf16>
    %c8 = arith.constant 8 : index
    %c0_131 = arith.constant 0 : index
    %c0_132 = arith.constant 0 : index
    %121 = vector.load %arg4[%c8, %c0_131, %c0_132] : memref<9x128x128xbf16, #tpu.memory_space<vmem>>, vector<1x128x128xbf16>
    %122 = vector.shape_cast %121 : vector<1x128x128xbf16> to vector<128x128xbf16>
    %cst_133 = arith.constant dense<0.000000e+00> : vector<64x128xf32>
    %123 = tpu.matmul %120, %122, %cst_133 {dimension_numbers = #tpu.dot_dimension_numbers<[1], [0], [0], [1], [0, 0, 1, 1], [], []>} : vector<64x128xbf16>, vector<128x128xbf16>, vector<64x128xf32> -> vector<64x128xf32>
    %124 = arith.addf %116, %123 : vector<64x128xf32>
    %c0_134 = arith.constant 0 : index
    %c0_135 = arith.constant 0 : index
    %125 = vector.load %arg5[%c0_134, %c0_135] : memref<1x128xf32, #tpu.memory_space<vmem>>, vector<1x128xf32>
    %126 = vector.broadcast %125 : vector<1x128xf32> to vector<64x128xf32>
    %127 = arith.addf %124, %126 : vector<64x128xf32>
    %cst_136 = arith.constant 0.000000e+00 : f32
    %128 = vector.broadcast %cst_136 : f32 to vector<64x128xf32>
    %129 = arith.maximumf %127, %128 : vector<64x128xf32>
    %130 = arith.truncf %129 : vector<64x128xf32> to vector<64x128xbf16>
    %c0_137 = arith.constant 0 : index
    %c0_138 = arith.constant 0 : index
    %131 = vector.load %arg6[%c0_137, %c0_138] : memref<128x128xbf16, #tpu.memory_space<vmem>>, vector<128x128xbf16>
    %cst_139 = arith.constant dense<0.000000e+00> : vector<64x128xf32>
    %132 = tpu.matmul %130, %131, %cst_139 {dimension_numbers = #tpu.dot_dimension_numbers<[1], [0], [0], [1], [0, 0, 1, 1], [], []>} : vector<64x128xbf16>, vector<128x128xbf16>, vector<64x128xf32> -> vector<64x128xf32>
    %c0_140 = arith.constant 0 : index
    %c0_141 = arith.constant 0 : index
    %133 = vector.load %arg7[%c0_140, %c0_141] : memref<1x128xf32, #tpu.memory_space<vmem>>, vector<1x128xf32>
    %134 = vector.broadcast %133 : vector<1x128xf32> to vector<64x128xf32>
    %135 = arith.addf %132, %134 : vector<64x128xf32>
    %c0_142 = arith.constant 0 : index
    %c0_143 = arith.constant 0 : index
    %c0_144 = arith.constant 0 : index
    %c0_145 = arith.constant 0 : index
    %c0_146 = arith.constant 0 : index
    %c0_147 = arith.constant 0 : index
    %136 = vector.load %arg1[%c0_142, %c0_143, %c0_144, %c0_145, %c0_146, %c0_147] : memref<1x2x2x8x8x128xbf16, #tpu.memory_space<vmem>>, vector<1x1x1x8x8x128xbf16>
    %137 = vector.shape_cast %136 : vector<1x1x1x8x8x128xbf16> to vector<8x8x128xbf16>
    %138 = vector.shape_cast %137 : vector<8x8x128xbf16> to vector<64x128xbf16>
    %c0_148 = arith.constant 0 : index
    %c0_149 = arith.constant 0 : index
    %139 = vector.load %arg8[%c0_148, %c0_149] : memref<128x128xbf16, #tpu.memory_space<vmem>>, vector<128x128xbf16>
    %cst_150 = arith.constant dense<0.000000e+00> : vector<64x128xf32>
    %140 = tpu.matmul %138, %139, %cst_150 {dimension_numbers = #tpu.dot_dimension_numbers<[1], [0], [0], [1], [0, 0, 1, 1], [], []>} : vector<64x128xbf16>, vector<128x128xbf16>, vector<64x128xf32> -> vector<64x128xf32>
    %c0_151 = arith.constant 0 : index
    %c0_152 = arith.constant 0 : index
    %141 = vector.load %arg9[%c0_151, %c0_152] : memref<1x128xf32, #tpu.memory_space<vmem>>, vector<1x128xf32>
    %142 = vector.broadcast %141 : vector<1x128xf32> to vector<64x128xf32>
    %143 = arith.addf %140, %142 : vector<64x128xf32>
    %144 = arith.addf %135, %143 : vector<64x128xf32>
    %cst_153 = arith.constant 0.000000e+00 : f32
    %145 = vector.broadcast %cst_153 : f32 to vector<64x128xf32>
    %146 = arith.maximumf %144, %145 : vector<64x128xf32>
    %147 = vector.shape_cast %146 : vector<64x128xf32> to vector<8x8x128xf32>
    %c0_154 = arith.constant 0 : index
    %c0_155 = arith.constant 0 : index
    %c0_156 = arith.constant 0 : index
    %c0_157 = arith.constant 0 : index
    %148 = vector.load %arg10[%c0_154, %c0_155, %c0_156, %c0_157] : memref<1x8x8x128xf32, #tpu.memory_space<vmem>>, vector<1x8x8x128xf32>
    %149 = vector.shape_cast %148 : vector<1x8x8x128xf32> to vector<8x8x128xf32>
    %150 = vector.shape_cast %147 : vector<8x8x128xf32> to vector<1x8x8x128xf32>
    tpu.vector_store %arg10[%c0_154, %c0_155, %c0_156, %c0_157], %150 {strides = array<i32>} : memref<1x8x8x128xf32, #tpu.memory_space<vmem>>, vector<1x8x8x128xf32>,
    return
  }
  func.func @transform_0(%arg0: i32) -> (i32, i32, i32, i32, i32, i32) {
    %c0_i32 = arith.constant 0 : i32
    %c0_i32_0 = arith.constant 0 : i32
    %c0_i32_1 = arith.constant 0 : i32
    %c0_i32_2 = arith.constant 0 : i32
    %c0_i32_3 = arith.constant 0 : i32
    %c0_i32_4 = arith.constant 0 : i32
    return %arg0, %c0_i32, %c0_i32_0, %c0_i32_1, %c0_i32_2, %c0_i32_3 : i32, i32, i32, i32, i32, i32
  }
  func.func @transform_1(%arg0: i32) -> (i32, i32) {
    %c0_i32 = arith.constant 0 : i32
    %c0_i32_0 = arith.constant 0 : i32
    %c0_i32_1 = arith.constant 0 : i32
    return %c0_i32, %c0_i32_0 : i32, i32
  }
  func.func @transform_2(%arg0: i32) -> (i32, i32) {
    %c0_i32 = arith.constant 0 : i32
    %c0_i32_0 = arith.constant 0 : i32
    %c0_i32_1 = arith.constant 0 : i32
    return %c0_i32, %c0_i32_0 : i32, i32
  }
  func.func @transform_3(%arg0: i32) -> (i32, i32, i32) {
    %c0_i32 = arith.constant 0 : i32
    %c0_i32_0 = arith.constant 0 : i32
    %c0_i32_1 = arith.constant 0 : i32
    %c0_i32_2 = arith.constant 0 : i32
    return %c0_i32, %c0_i32_0, %c0_i32_1 : i32, i32, i32
  }
  func.func @transform_4(%arg0: i32) -> (i32, i32) {
    %c0_i32 = arith.constant 0 : i32
    %c0_i32_0 = arith.constant 0 : i32
    %c0_i32_1 = arith.constant 0 : i32
    return %c0_i32, %c0_i32_0 : i32, i32
  }
  func.func @transform_5(%arg0: i32) -> (i32, i32) {
    %c0_i32 = arith.constant 0 : i32
    %c0_i32_0 = arith.constant 0 : i32
    %c0_i32_1 = arith.constant 0 : i32
    return %c0_i32, %c0_i32_0 : i32, i32
  }
  func.func @transform_6(%arg0: i32) -> (i32, i32) {
    %c0_i32 = arith.constant 0 : i32
    %c0_i32_0 = arith.constant 0 : i32
    %c0_i32_1 = arith.constant 0 : i32
    return %c0_i32, %c0_i32_0 : i32, i32
  }
  func.func @transform_7(%arg0: i32) -> (i32, i32) {
    %c0_i32 = arith.constant 0 : i32
    %c0_i32_0 = arith.constant 0 : i32
    %c0_i32_1 = arith.constant 0 : i32
    return %c0_i32, %c0_i32_0 : i32, i32
  }
  func.func @transform_8(%arg0: i32) -> (i32, i32) {
    %c0_i32 = arith.constant 0 : i32
    %c0_i32_0 = arith.constant 0 : i32
    %c0_i32_1 = arith.constant 0 : i32
    return %c0_i32, %c0_i32_0 : i32, i32
  }
  func.func @transform_9(%arg0: i32) -> (i32, i32, i32, i32) {
    %c0_i32 = arith.constant 0 : i32
    %c0_i32_0 = arith.constant 0 : i32
    %c0_i32_1 = arith.constant 0 : i32
    %c0_i32_2 = arith.constant 0 : i32
    return %arg0, %c0_i32, %c0_i32_0, %c0_i32_1 : i32, i32, i32, i32
  }
}

</mosaic_0001>

<llo_original>
// kernel: bottleneck_forward.1
$region0: #{bottleneck_forward.1}
  #allocation0 [shape = 'u32[]', space=smem, size = 0x4, offset = 0x4, fixed_abs, tag = 'smem constant byte address 0x4 - core index']
  #allocation1 [shape = 'u32[144,128]{1,0:T(1,128)}', space=vmem, size = 0x12000, scoped, tag = 'internal scratch']
  #allocation2 [shape = 'f32[2,9,2,9,128]{4,3,2,1,0:T(8,128)}', space=vmem, size = 0x48000, scoped, tag = 'scratch operand']
  %s0 = inlined_call_operand.vmem [shape: bf16[2,2,2,8,8,128], index: 0, kind: input, shape index: {}]
  %s1 = inlined_call_operand.vmem [shape: bf16[128,128], index: 1, kind: input, shape index: {}]
  %s2 = inlined_call_operand.vmem [shape: f32[1,128], index: 2, kind: input, shape index: {}]
  %s3 = inlined_call_operand.vmem [shape: bf16[9,128,128], index: 3, kind: input, shape index: {}]
  %s4 = inlined_call_operand.vmem [shape: f32[1,128], index: 4, kind: input, shape index: {}]
  %s5 = inlined_call_operand.vmem [shape: bf16[128,128], index: 5, kind: input, shape index: {}]
  %s6 = inlined_call_operand.vmem [shape: f32[1,128], index: 6, kind: input, shape index: {}]
  %s7 = inlined_call_operand.vmem [shape: bf16[128,128], index: 7, kind: input, shape index: {}]
  %s8 = inlined_call_operand.vmem [shape: f32[1,128], index: 8, kind: input, shape index: {}]
  %s9 = inlined_call_operand.vmem [shape: f32[2,8,8,128], index: 9, kind: output, shape index: {}]
  %s10 = sld [smem:[#allocation0]]
  $region69: #{bottleneck_forward.1} parent=0
    _
  %s12 = ssub.s32 1, %s10
  %s13 = scalar_select 0, %s12, %s10
  loop: start=0, step=1, limit=4
  $region2: #{bottleneck_forward.1} parent=0 // loop_pre_header
    _
  $region3: #{bottleneck_forward.1} parent=0 // loop_header
    %s15 = sphi 0, %s19
    %p16 = scmp.ge.s32.totalorder %s15, 4
    %s25 = sphi 0, %s27
    %s28 = sphi 0, %s25
    %s29 = sphi 0, %s28
    %s45 = sphi 0, %s29
    %s49 = sphi 0, %s49
    %s51 = sphi 0, %s49
    %s52 = sphi 0, %s51
    %s66 = sphi 0, %s52
    %s70 = sphi 0, %s70
    %s72 = sphi 0, %s70
    %s73 = sphi 0, %s72
    %s87 = sphi 0, %s73
    %s91 = sphi 0, %s91
    %s93 = sphi 0, %s91
    %s94 = sphi 0, %s93
    %s108 = sphi 0, %s94
    %s112 = sphi 0, %s112
    %s114 = sphi 0, %s112
    %s115 = sphi 0, %s114
    %s129 = sphi 0, %s115
    %s133 = sphi 0, %s133
    %s135 = sphi 0, %s133
    %s136 = sphi 0, %s135
    %s150 = sphi 0, %s136
    %s154 = sphi 0, %s154
    %s156 = sphi 0, %s154
    %s157 = sphi 0, %s156
    %s171 = sphi 0, %s157
    %s175 = sphi 0, %s175
    %s177 = sphi 0, %s175
    %s178 = sphi 0, %s177
    %s192 = sphi 0, %s178
    %s196 = sphi 0, %s196
    %s198 = sphi 0, %s196
    %s199 = sphi 0, %s198
    %s213 = sphi 0, %s199
    %s219 = sphi 0, %s221
    %s222 = sphi 0, %s219
    %s223 = sphi 0, %s222
    %s239 = sphi 0, %s223
  $region4: #{bottleneck_forward.1} parent=0 // loop_header_branch
    %18 = sbr.rel (%p16) target = $region8
  $region5: #{bottleneck_forward.1} parent=0 // loop_body
    %s20 = ssub.s32 %s15, 1
    %s21 = ssub.s32 %s15, 2
    %s22 = sadd.s32 %s15, 1
    %s23 = ssub.s32 %s15, %s22
    %p24 = scmp.eq.s32.totalorder %s23, 0
    %s26 = sadd.s32 %s25, 1
    %s27 = scalar_select %p24, %s25, %s26
    %p30 = pneg %p24
    %p31 = scmp.eq.s32.totalorder %s15, 1
    %p32 = por %p30, %p31
    %p33 = scmp.ne.s32.totalorder %s25, %s28
    %p34 = scmp.eq.s32.totalorder %s15, 0
    %p35 = por %p33, %p34
    %p36 = scmp.ne.s32.totalorder %s25, %s28
    %p37 = scmp.eq.s32.totalorder %s20, 1
    %p38 = por %p36, %p37
    %p39 = scmp.ne.s32.totalorder %s28, %s29
    %p40 = scmp.eq.s32.totalorder %s20, 0
    %p41 = por %p39, %p40
    %p42 = scmp.ne.s32.totalorder %s28, %s29
    %p43 = scmp.eq.s32.totalorder %s21, 1
    %p44 = por %p42, %p43
    %p46 = scmp.ne.s32.totalorder %s29, %s45
    %p47 = scmp.eq.s32.totalorder %s21, 0
    %p48 = por %p46, %p47
    %s50 = sadd.s32 %s49, 1
    %p53 = scmp.eq.s32.totalorder %s15, 1
    %p54 = scmp.ne.s32.totalorder %s49, %s51
    %p55 = scmp.eq.s32.totalorder %s15, 0
    %p56 = por %p54, %p55
    %p57 = scmp.ne.s32.totalorder %s49, %s51
    %p58 = scmp.eq.s32.totalorder %s20, 1
    %p59 = por %p57, %p58
    %p60 = scmp.ne.s32.totalorder %s51, %s52
    %p61 = scmp.eq.s32.totalorder %s20, 0
    %p62 = por %p60, %p61
    %p63 = scmp.ne.s32.totalorder %s51, %s52
    %p64 = scmp.eq.s32.totalorder %s21, 1
    %p65 = por %p63, %p64
    %p67 = scmp.ne.s32.totalorder %s52, %s66
    %p68 = scmp.eq.s32.totalorder %s21, 0
    %p69 = por %p67, %p68
    %s71 = sadd.s32 %s70, 1
    %p74 = scmp.eq.s32.totalorder %s15, 1
    %p75 = scmp.ne.s32.totalorder %s70, %s72
    %p76 = scmp.eq.s32.totalorder %s15, 0
    %p77 = por %p75, %p76
    %p78 = scmp.ne.s32.totalorder %s70, %s72
    %p79 = scmp.eq.s32.totalorder %s20, 1
    %p80 = por %p78, %p79
    %p81 = scmp.ne.s32.totalorder %s72, %s73
    %p82 = scmp.eq.s32.totalorder %s20, 0
    %p83 = por %p81, %p82
    %p84 = scmp.ne.s32.totalorder %s72, %s73
    %p85 = scmp.eq.s32.totalorder %s21, 1
    %p86 = por %p84, %p85
    %p88 = scmp.ne.s32.totalorder %s73, %s87
    %p89 = scmp.eq.s32.totalorder %s21, 0
    %p90 = por %p88, %p89
    %s92 = sadd.s32 %s91, 1
    %p95 = scmp.eq.s32.totalorder %s15, 1
    %p96 = scmp.ne.s32.totalorder %s91, %s93
    %p97 = scmp.eq.s32.totalorder %s15, 0
    %p98 = por %p96, %p97
    %p99 = scmp.ne.s32.totalorder %s91, %s93
    %p100 = scmp.eq.s32.totalorder %s20, 1
    %p101 = por %p99, %p100
    %p102 = scmp.ne.s32.totalorder %s93, %s94
    %p103 = scmp.eq.s32.totalorder %s20, 0
    %p104 = por %p102, %p103
    %p105 = scmp.ne.s32.totalorder %s93, %s94
    %p106 = scmp.eq.s32.totalorder %s21, 1
    %p107 = por %p105, %p106
    %p109 = scmp.ne.s32.totalorder %s94, %s108
    %p110 = scmp.eq.s32.totalorder %s21, 0
    %p111 = por %p109, %p110
    %s113 = sadd.s32 %s112, 1
    %p116 = scmp.eq.s32.totalorder %s15, 1
    %p117 = scmp.ne.s32.totalorder %s112, %s114
    %p118 = scmp.eq.s32.totalorder %s15, 0
    %p119 = por %p117, %p118
    %p120 = scmp.ne.s32.totalorder %s112, %s114
    %p121 = scmp.eq.s32.totalorder %s20, 1
    %p122 = por %p120, %p121
    %p123 = scmp.ne.s32.totalorder %s114, %s115
    %p124 = scmp.eq.s32.totalorder %s20, 0
    %p125 = por %p123, %p124
    %p126 = scmp.ne.s32.totalorder %s114, %s115
    %p127 = scmp.eq.s32.totalorder %s21, 1
    %p128 = por %p126, %p127
    %p130 = scmp.ne.s32.totalorder %s115, %s129
    %p131 = scmp.eq.s32.totalorder %s21, 0
    %p132 = por %p130, %p131
    %s134 = sadd.s32 %s133, 1
    %p137 = scmp.eq.s32.totalorder %s15, 1
    %p138 = scmp.ne.s32.totalorder %s133, %s135
    %p139 = scmp.eq.s32.totalorder %s15, 0
    %p140 = por %p138, %p139
    %p141 = scmp.ne.s32.totalorder %s133, %s135
    %p142 = scmp.eq.s32.totalorder %s20, 1
    %p143 = por %p141, %p142
    %p144 = scmp.ne.s32.totalorder %s135, %s136
    %p145 = scmp.eq.s32.totalorder %s20, 0
    %p146 = por %p144, %p145
    %p147 = scmp.ne.s32.totalorder %s135, %s136
    %p148 = scmp.eq.s32.totalorder %s21, 1
    %p149 = por %p147, %p148
    %p151 = scmp.ne.s32.totalorder %s136, %s150
    %p152 = scmp.eq.s32.totalorder %s21, 0
    %p153 = por %p151, %p152
    %s155 = sadd.s32 %s154, 1
    %p158 = scmp.eq.s32.totalorder %s15, 1
    %p159 = scmp.ne.s32.totalorder %s154, %s156
    %p160 = scmp.eq.s32.totalorder %s15, 0
    %p161 = por %p159, %p160
    %p162 = scmp.ne.s32.totalorder %s154, %s156
    %p163 = scmp.eq.s32.totalorder %s20, 1
    %p164 = por %p162, %p163
    %p165 = scmp.ne.s32.totalorder %s156, %s157
    %p166 = scmp.eq.s32.totalorder %s20, 0
    %p167 = por %p165, %p166
    %p168 = scmp.ne.s32.totalorder %s156, %s157
    %p169 = scmp.eq.s32.totalorder %s21, 1
    %p170 = por %p168, %p169
    %p172 = scmp.ne.s32.totalorder %s157, %s171
    %p173 = scmp.eq.s32.totalorder %s21, 0
    %p174 = por %p172, %p173
    %s176 = sadd.s32 %s175, 1
    %p179 = scmp.eq.s32.totalorder %s15, 1
    %p180 = scmp.ne.s32.totalorder %s175, %s177
    %p181 = scmp.eq.s32.totalorder %s15, 0
    %p182 = por %p180, %p181
    %p183 = scmp.ne.s32.totalorder %s175, %s177
    %p184 = scmp.eq.s32.totalorder %s20, 1
    %p185 = por %p183, %p184
    %p186 = scmp.ne.s32.totalorder %s177, %s178
    %p187 = scmp.eq.s32.totalorder %s20, 0
    %p188 = por %p186, %p187
    %p189 = scmp.ne.s32.totalorder %s177, %s178
    %p190 = scmp.eq.s32.totalorder %s21, 1
    %p191 = por %p189, %p190
    %p193 = scmp.ne.s32.totalorder %s178, %s192
    %p194 = scmp.eq.s32.totalorder %s21, 0
    %p195 = por %p193, %p194
    %s197 = sadd.s32 %s196, 1
    %p200 = scmp.eq.s32.totalorder %s15, 1
    %p201 = scmp.ne.s32.totalorder %s196, %s198
    %p202 = scmp.eq.s32.totalorder %s15, 0
    %p203 = por %p201, %p202
    %p204 = scmp.ne.s32.totalorder %s196, %s198
    %p205 = scmp.eq.s32.totalorder %s20, 1
    %p206 = por %p204, %p205
    %p207 = scmp.ne.s32.totalorder %s198, %s199
    %p208 = scmp.eq.s32.totalorder %s20, 0
    %p209 = por %p207, %p208
    %p210 = scmp.ne.s32.totalorder %s198, %s199
    %p211 = scmp.eq.s32.totalorder %s21, 1
    %p212 = por %p210, %p211
    %p214 = scmp.ne.s32.totalorder %s199, %s213
    %p215 = scmp.eq.s32.totalorder %s21, 0
    %p216 = por %p214, %p215
    %s217 = ssub.s32 %s15, %s22
    %p218 = scmp.eq.s32.totalorder %s217, 0
    %s220 = sadd.s32 %s219, 1
    %s221 = scalar_select %p218, %s219, %s220
    %p224 = pneg %p218
    %p225 = scmp.eq.s32.totalorder %s15, 1
    %p226 = por %p224, %p225
    %p227 = scmp.ne.s32.totalorder %s219, %s222
    %p228 = scmp.eq.s32.totalorder %s15, 0
    %p229 = por %p227, %p228
    %p230 = scmp.ne.s32.totalorder %s219, %s222
    %p231 = scmp.eq.s32.totalorder %s20, 1
    %p232 = por %p230, %p231
    %p233 = scmp.ne.s32.totalorder %s222, %s223
    %p234 = scmp.eq.s32.totalorder %s20, 0
    %p235 = por %p233, %p234
    %p236 = scmp.ne.s32.totalorder %s222, %s223
    %p237 = scmp.eq.s32.totalorder %s21, 1
    %p238 = por %p236, %p237
    %p240 = scmp.ne.s32.totalorder %s223, %s239
    %p241 = scmp.eq.s32.totalorder %s21, 0
    %p242 = por %p240, %p241
    %p243 = scmp.le.s32.totalorder 1, %s15
    %p244 = scmp.lt.s32.totalorder %s15, 3
    %p245 = pnand %p243, %p244
    %p246 = pneg %p245
    // Predicated region
    $region9: #{bottleneck_forward.1} parent=5 // pred_check
      _
    $region10: #{bottleneck_forward.1} parent=5 // pred_check_branch
      %248 = sbr.rel (%p245) target = $region12
    $region11: #{bottleneck_forward.1} parent=5 // pred_region
      %s249 = ssub.s32 %s15, 1
      // Predicated region
      $region13: #{bottleneck_forward.1} parent=11 // pred_check
        %p250 = pneg %p62
      $region14: #{bottleneck_forward.1} parent=11 // pred_check_branch
        %252 = sbr.rel (%p250) target = $region16
      $region15: #{bottleneck_forward.1} parent=11 // pred_region
        _
      $region16: #{bottleneck_forward.1} parent=11 // pred_fallthru
        _
      // Predicated region
      $region17: #{bottleneck_forward.1} parent=11 // pred_check
        %p253 = pneg %p83
      $region18: #{bottleneck_forward.1} parent=11 // pred_check_branch
        %255 = sbr.rel (%p253) target = $region20
      $region19: #{bottleneck_forward.1} parent=11 // pred_region
        _
      $region20: #{bottleneck_forward.1} parent=11 // pred_fallthru
        _
      // Predicated region
      $region21: #{bottleneck_forward.1} parent=11 // pred_check
        %p256 = pneg %p104
      $region22: #{bottleneck_forward.1} parent=11 // pred_check_branch
        %258 = sbr.rel (%p256) target = $region24
      $region23: #{bottleneck_forward.1} parent=11 // pred_region
        _
      $region24: #{bottleneck_forward.1} parent=11 // pred_fallthru
        _
      // Predicated region
      $region25: #{bottleneck_forward.1} parent=11 // pred_check
        %p259 = pneg %p125
      $region26: #{bottleneck_forward.1} parent=11 // pred_check_branch
        %261 = sbr.rel (%p259) target = $region28
      $region27: #{bottleneck_forward.1} parent=11 // pred_region
        _
      $region28: #{bottleneck_forward.1} parent=11 // pred_fallthru
        _
      // Predicated region
      $region29: #{bottleneck_forward.1} parent=11 // pred_check
        %p262 = pneg %p146
      $region30: #{bottleneck_forward.1} parent=11 // pred_check_branch
        %264 = sbr.rel (%p262) target = $region32
      $region31: #{bottleneck_forward.1} parent=11 // pred_region
        _
      $region32: #{bottleneck_forward.1} parent=11 // pred_fallthru
        _
      // Predicated region
      $region33: #{bottleneck_forward.1} parent=11 // pred_check
        %p265 = pneg %p167
      $region34: #{bottleneck_forward.1} parent=11 // pred_check_branch
        %267 = sbr.rel (%p265) target = $region36
      $region35: #{bottleneck_forward.1} parent=11 // pred_region
        _
      $region36: #{bottleneck_forward.1} parent=11 // pred_fallthru
        _
      // Predicated region
      $region37: #{bottleneck_forward.1} parent=11 // pred_check
        %p268 = pneg %p188
      $region38: #{bottleneck_forward.1} parent=11 // pred_check_branch
        %270 = sbr.rel (%p268) target = $region40
      $region39: #{bottleneck_forward.1} parent=11 // pred_region
        _
      $region40: #{bottleneck_forward.1} parent=11 // pred_fallthru
        _
      // Predicated region
      $region41: #{bottleneck_forward.1} parent=11 // pred_check
        %p271 = pneg %p209
      $region42: #{bottleneck_forward.1} parent=11 // pred_check_branch
        %273 = sbr.rel (%p271) target = $region44
      $region43: #{bottleneck_forward.1} parent=11 // pred_region
        _
      $region44: #{bottleneck_forward.1} parent=11 // pred_fallthru
        _
    $region12: #{bottleneck_forward.1} parent=5 // pred_fallthru
      _
    %p274 = scmp.lt.s32.totalorder %s15, 2
    // Predicated region
    $region45: #{bottleneck_forward.1} parent=5 // pred_check
      %p275 = pneg %p274
    $region46: #{bottleneck_forward.1} parent=5 // pred_check_branch
      %277 = sbr.rel (%p275) target = $region48
    $region47: #{bottleneck_forward.1} parent=5 // pred_region
      // Predicated region
      $region49: #{bottleneck_forward.1} parent=47 // pred_check
        %p278 = pneg %p35
      $region50: #{bottleneck_forward.1} parent=47 // pred_check_branch
        %280 = sbr.rel (%p278) target = $region52
      $region51: #{bottleneck_forward.1} parent=47 // pred_region
        %p281 = scmp.lt.s32.totalorder %s15, 1
        %s282 = scalar_select %p281, %s15, 1
        %s283 = smul.addr %s282, 32
        %s284 = smul.addr %s283, 4
        %s285 = scalar_lea.vmem %s0, %s284
      $region52: #{bottleneck_forward.1} parent=47 // pred_fallthru
        _
    $region48: #{bottleneck_forward.1} parent=5 // pred_fallthru
      _
    %p286 = scmp.le.s32.totalorder 1, %s15
    %p287 = scmp.lt.s32.totalorder %s15, 3
    %p288 = pnand %p286, %p287
    %p289 = pneg %p288
    // Predicated region
    $region53: #{bottleneck_forward.1} parent=5 // pred_check
      _
    $region54: #{bottleneck_forward.1} parent=5 // pred_check_branch
      %291 = sbr.rel (%p288) target = $region56
    $region55: #{bottleneck_forward.1} parent=5 // pred_region
      %s292 = ssub.s32 %s15, 1
      %p293 = scmp.lt.s32.totalorder %s20, 1
      %s294 = scalar_select %p293, %s20, 1
      %s295 = smul.addr %s294, 32
      %s296 = smul.addr %s295, 4
      %s297 = scalar_lea.vmem %s0, %s296
      %p298 = pneg %p41
      %p299 = pneg %p38
      %p300 = pneg %p62
      %p301 = pneg %p59
      %p302 = pneg %p83
      %p303 = pneg %p80
      %p304 = pneg %p104
      %p305 = pneg %p101
      %p306 = pneg %p125
      %p307 = pneg %p122
      %p308 = pneg %p146
      %p309 = pneg %p143
      %p310 = pneg %p167
      %p311 = pneg %p164
      %p312 = pneg %p188
      %p313 = pneg %p185
      %p314 = pneg %p209
      %p315 = pneg %p206
      %p316 = pneg %p235
      %p317 = pneg %p232
      %p318 = scmp.lt.s32.totalorder %s20, 1
      %s319 = scalar_select %p318, %s20, 1
      %s320 = smul.addr %s319, 8
      %s321 = smul.addr %s320, 8
      %s322 = scalar_lea.vmem %s9, %s321
      %p323 = scmp.lt.s32.totalorder %s20, 1
      %s324 = scalar_select %p323, %s20, 1
      %s325 = smul.addr %s324, 32
      %s326 = smul.addr %s325, 4
      %s327 = scalar_lea.vmem %s0, %s326
      %p328 = scmp.lt.s32.totalorder %s20, 1
      %s329 = scalar_select %p328, %s20, 1
      %s330 = smul.addr %s329, 8
      %s331 = smul.addr %s330, 8
      %s332 = scalar_lea.vmem %s9, %s331
      %334 = vst [vmem:[#allocation2] sm:$0xff] 0.0
      %335 = vst [vmem:[#allocation2 + $0x8] sm:$0x1] 0.0
      %336 = vst [vmem:[#allocation2 + $0x10] sm:$0xff] 0.0
      %337 = vst [vmem:[#allocation2 + $0x18] sm:$0x1] 0.0
      %338 = vst [vmem:[#allocation2 + $0x20] sm:$0xff] 0.0
      %339 = vst [vmem:[#allocation2 + $0x28] sm:$0x1] 0.0
      %340 = vst [vmem:[#allocation2 + $0x30] sm:$0xff] 0.0
      %341 = vst [vmem:[#allocation2 + $0x38] sm:$0x1] 0.0
      %342 = vst [vmem:[#allocation2 + $0x40] sm:$0xff] 0.0
      %343 = vst [vmem:[#allocation2 + $0x48] sm:$0x1] 0.0
      %344 = vst [vmem:[#allocation2 + $0x50] sm:$0xff] 0.0
      %345 = vst [vmem:[#allocation2 + $0x58] sm:$0x1] 0.0
      %346 = vst [vmem:[#allocation2 + $0x60] sm:$0xff] 0.0
      %347 = vst [vmem:[#allocation2 + $0x68] sm:$0x1] 0.0
      %348 = vst [vmem:[#allocation2 + $0x70] sm:$0xff] 0.0
      %349 = vst [vmem:[#allocation2 + $0x78] sm:$0x1] 0.0
      %350 = vst [vmem:[#allocation2 + $0x80] sm:$0xff] 0.0
      %351 = vst [vmem:[#allocation2 + $0x88] sm:$0x1] 0.0
      %352 = vst [vmem:[#allocation2 + $0x90] sm:$0xff] 0.0
      %353 = vst [vmem:[#allocation2 + $0x98] sm:$0x1] 0.0
      %354 = vst [vmem:[#allocation2 + $0xa0] sm:$0xff] 0.0
      %355 = vst [vmem:[#allocation2 + $0xa8] sm:$0x1] 0.0
      %356 = vst [vmem:[#allocation2 + $0xb0] sm:$0xff] 0.0
      %357 = vst [vmem:[#allocation2 + $0xb8] sm:$0x1] 0.0
      %358 = vst [vmem:[#allocation2 + $0xc0] sm:$0xff] 0.0
      %359 = vst [vmem:[#allocation2 + $0xc8] sm:$0x1] 0.0
      %360 = vst [vmem:[#allocation2 + $0xd0] sm:$0xff] 0.0
      %361 = vst [vmem:[#allocation2 + $0xd8] sm:$0x1] 0.0
      %362 = vst [vmem:[#allocation2 + $0xe0] sm:$0xff] 0.0
      %363 = vst [vmem:[#allocation2 + $0xe8] sm:$0x1] 0.0
      %364 = vst [vmem:[#allocation2 + $0xf0] sm:$0xff] 0.0
      %365 = vst [vmem:[#allocation2 + $0xf8] sm:$0x1] 0.0
      %366 = vst [vmem:[#allocation2 + $0x100] sm:$0xff] 0.0
      %367 = vst [vmem:[#allocation2 + $0x108] sm:$0x1] 0.0
      %368 = vst [vmem:[#allocation2 + $0x110] sm:$0xff] 0.0
      %369 = vst [vmem:[#allocation2 + $0x118] sm:$0x1] 0.0
      %370 = vst [vmem:[#allocation2 + $0x120] sm:$0xff] 0.0
      %371 = vst [vmem:[#allocation2 + $0x128] sm:$0x1] 0.0
      %372 = vst [vmem:[#allocation2 + $0x130] sm:$0xff] 0.0
      %373 = vst [vmem:[#allocation2 + $0x138] sm:$0x1] 0.0
      %374 = vst [vmem:[#allocation2 + $0x140] sm:$0xff] 0.0
      %375 = vst [vmem:[#allocation2 + $0x148] sm:$0x1] 0.0
      %376 = vst [vmem:[#allocation2 + $0x150] sm:$0xff] 0.0
      %377 = vst [vmem:[#allocation2 + $0x158] sm:$0x1] 0.0
      %378 = vst [vmem:[#allocation2 + $0x160] sm:$0xff] 0.0
      %379 = vst [vmem:[#allocation2 + $0x168] sm:$0x1] 0.0
      %380 = vst [vmem:[#allocation2 + $0x170] sm:$0xff] 0.0
      %381 = vst [vmem:[#allocation2 + $0x178] sm:$0x1] 0.0
      %382 = vst [vmem:[#allocation2 + $0x180] sm:$0xff] 0.0
      %383 = vst [vmem:[#allocation2 + $0x188] sm:$0x1] 0.0
      %384 = vst [vmem:[#allocation2 + $0x190] sm:$0xff] 0.0
      %385 = vst [vmem:[#allocation2 + $0x198] sm:$0x1] 0.0
      %386 = vst [vmem:[#allocation2 + $0x1a0] sm:$0xff] 0.0
      %387 = vst [vmem:[#allocation2 + $0x1a8] sm:$0x1] 0.0
      %388 = vst [vmem:[#allocation2 + $0x1b0] sm:$0xff] 0.0
      %389 = vst [vmem:[#allocation2 + $0x1b8] sm:$0x1] 0.0
      %390 = vst [vmem:[#allocation2 + $0x1c0] sm:$0xff] 0.0
      %391 = vst [vmem:[#allocation2 + $0x1c8] sm:$0x1] 0.0
      %392 = vst [vmem:[#allocation2 + $0x1d0] sm:$0xff] 0.0
      %393 = vst [vmem:[#allocation2 + $0x1d8] sm:$0x1] 0.0
      %394 = vst [vmem:[#allocation2 + $0x1e0] sm:$0xff] 0.0
      %395 = vst [vmem:[#allocation2 + $0x1e8] sm:$0x1] 0.0
      %396 = vst [vmem:[#allocation2 + $0x1f0] sm:$0xff] 0.0
      %397 = vst [vmem:[#allocation2 + $0x1f8] sm:$0x1] 0.0
      %398 = vst [vmem:[#allocation2 + $0x200] sm:$0xff] 0.0
      %399 = vst [vmem:[#allocation2 + $0x208] sm:$0x1] 0.0
      %400 = vst [vmem:[#allocation2 + $0x210] sm:$0xff] 0.0
      %401 = vst [vmem:[#allocation2 + $0x218] sm:$0x1] 0.0
      %402 = vst [vmem:[#allocation2 + $0x220] sm:$0xff] 0.0
      %403 = vst [vmem:[#allocation2 + $0x228] sm:$0x1] 0.0
      %404 = vst [vmem:[#allocation2 + $0x230] sm:$0xff] 0.0
      %405 = vst [vmem:[#allocation2 + $0x238] sm:$0x1] 0.0
      %v406 = vld [vmem:[%s1] sm:$0xf]
      %v407 = vld [vmem:[%s1 + $0x4] sm:$0xf]
      %v408 = vld [vmem:[%s1 + $0x8] sm:$0xf]
      %v409 = vld [vmem:[%s1 + $0xc] sm:$0xf]
      %v410 = vld [vmem:[%s1 + $0x10] sm:$0xf]
      %v411 = vld [vmem:[%s1 + $0x14] sm:$0xf]
      %v412 = vld [vmem:[%s1 + $0x18] sm:$0xf]
      %v413 = vld [vmem:[%s1 + $0x1c] sm:$0xf]
      %v414 = vld [vmem:[%s1 + $0x20] sm:$0xf]
      %v415 = vld [vmem:[%s1 + $0x24] sm:$0xf]
      %v416 = vld [vmem:[%s1 + $0x28] sm:$0xf]
      %v417 = vld [vmem:[%s1 + $0x2c] sm:$0xf]
      %v418 = vld [vmem:[%s1 + $0x30] sm:$0xf]
      %v419 = vld [vmem:[%s1 + $0x34] sm:$0xf]
      %v420 = vld [vmem:[%s1 + $0x38] sm:$0xf]
      %v421 = vld [vmem:[%s1 + $0x3c] sm:$0xf]
      %v422 = vld [vmem:[%s2] sm:$0x1]
      %v423 = vld [vmem:[%s327] sm:$0xf]
      %v424 = vld [vmem:[%s327 + $0x4] sm:$0xf]
      %v425 = vld [vmem:[%s327 + $0x8] sm:$0xf]
      %v426 = vld [vmem:[%s327 + $0xc] sm:$0xf]
      %v427 = vld [vmem:[%s327 + $0x10] sm:$0xf]
      %v428 = vld [vmem:[%s327 + $0x14] sm:$0xf]
      %v429 = vld [vmem:[%s327 + $0x18] sm:$0xf]
      %v430 = vld [vmem:[%s327 + $0x1c] sm:$0xf]
      %v432 = vlaneseq
      %v433 = vshrl.u32 %v432, 7
      %v434 = vsub.s32 0, %v433
      %v435 = vrot.slane %v422, %v434
      %v445 = vunpack.c.l.b16 %v423
      %v446 = vunpack.c.l.b16 %v424
      %v447 = vunpack.c.l.b16 %v425
      %v448 = vunpack.c.l.b16 %v426
      %v449 = vunpack.c.l.b16 %v427
      %v450 = vunpack.c.l.b16 %v428
      %v451 = vunpack.c.l.b16 %v429
      %v452 = vunpack.c.l.b16 %v430
      %v453 = vpack.c.b16 %v446, %v445
      %v454 = vpack.c.b16 %v448, %v447
      %v455 = vpack.c.b16 %v450, %v449
      %v456 = vpack.c.b16 %v452, %v451
      %v477 = vunpack.c.l.b16 %v406
      %v478 = vunpack.c.l.b16 %v407
      %v479 = vunpack.c.l.b16 %v408
      %v480 = vunpack.c.l.b16 %v409
      %v481 = vunpack.c.l.b16 %v410
      %v482 = vunpack.c.l.b16 %v411
      %v483 = vunpack.c.l.b16 %v412
      %v484 = vunpack.c.l.b16 %v413
      %v485 = vunpack.c.l.b16 %v414
      %v486 = vunpack.c.l.b16 %v415
      %v487 = vunpack.c.l.b16 %v416
      %v488 = vunpack.c.l.b16 %v417
      %v489 = vunpack.c.l.b16 %v418
      %v490 = vunpack.c.l.b16 %v419
      %v491 = vunpack.c.l.b16 %v420
      %v492 = vunpack.c.l.b16 %v421
      %v493 = vpack.c.b16 %v478, %v477
      %v494 = vpack.c.b16 %v480, %v479
      %v495 = vpack.c.b16 %v482, %v481
      %v496 = vpack.c.b16 %v484, %v483
      %v497 = vpack.c.b16 %v486, %v485
      %v498 = vpack.c.b16 %v488, %v487
      %v499 = vpack.c.b16 %v490, %v489
      %v500 = vpack.c.b16 %v492, %v491
      %509 = vmatprep.subr.bf16.mxu0 0
      %510 = vmatpush1.bf16.msra.mxu0 %v500
      %511 = vmatprep.subr.bf16.mxu0 0
      %512 = vmatpush1.bf16.msra.mxu0 %v499
      %513 = vmatprep.subr.bf16.mxu0 0
      %514 = vmatpush1.bf16.msra.mxu0 %v498
      %515 = vmatprep.subr.bf16.mxu0 0
      %516 = vmatpush1.bf16.msra.mxu0 %v497
      %517 = vmatprep.subr.bf16.mxu0 0
      %518 = vmatpush1.bf16.msra.mxu0 %v496
      %519 = vmatprep.subr.bf16.mxu0 0
      %520 = vmatpush1.bf16.msra.mxu0 %v495
      %521 = vmatprep.subr.bf16.mxu0 0
      %522 = vmatpush1.bf16.msra.mxu0 %v494
      %523 = vmatprep.subr.bf16.mxu0 0
      %524 = vmatpush1.bf16.msra.mxu0 %v493
      %525 = vmatprep.subr.bf16.mxu0 0
      %526 = vmatpush2.bf16.msra.mxu0 0
      %527 = vmatprep.subr.bf16.mxu0 0
      %528 = vmatpush2.bf16.msra.mxu0 0
      %529 = vmatprep.subr.bf16.mxu0 0
      %530 = vmatpush2.bf16.msra.mxu0 0
      %531 = vmatprep.subr.bf16.mxu0 0
      %532 = vmatpush2.bf16.msra.mxu0 0
      %533 = vmatprep.subr.bf16.mxu0 0
      %534 = vmatpush2.bf16.msra.mxu0 0
      %535 = vmatprep.subr.bf16.mxu0 0
      %536 = vmatpush2.bf16.msra.mxu0 0
      %537 = vmatprep.subr.bf16.mxu0 0
      %538 = vmatpush2.bf16.msra.mxu0 0
      %539 = vmatprep.subr.bf16.mxu0 0
      %540 = vmatpush2.bf16.msra.mxu0 0
      %541 = vmatprep.mubr.bf16.mxu0 0
      %542 = vmatmul.mubr.bf16.gmra.mxu0 %v453
      %v543 = vpop.f32.mrf.mxu0
      %v544 = vadd.f32 %v435, %v543
      %v545 = vpop.f32.mrf.mxu0
      %v546 = vpop.f32.mrf.mxu0
      %v547 = vadd.f32 %v435, %v546
      %v548 = vpop.f32.mrf.mxu0
      %549 = vmatprep.mubr.bf16.mxu0 0
      %550 = vmatmul.mubr.bf16.gmra.mxu0 %v454
      %v551 = vpop.f32.mrf.mxu0
      %v552 = vadd.f32 %v435, %v551
      %v553 = vpop.f32.mrf.mxu0
      %v554 = vpop.f32.mrf.mxu0
      %v555 = vadd.f32 %v435, %v554
      %v556 = vpop.f32.mrf.mxu0
      %557 = vmatprep.mubr.bf16.mxu0 0
      %558 = vmatmul.mubr.bf16.gmra.mxu0 %v455
      %v559 = vpop.f32.mrf.mxu0
      %v560 = vadd.f32 %v435, %v559
      %v561 = vpop.f32.mrf.mxu0
      %v562 = vpop.f32.mrf.mxu0
      %v563 = vadd.f32 %v435, %v562
      %v564 = vpop.f32.mrf.mxu0
      %565 = vmatprep.mubr.bf16.mxu0 0
      %566 = vmatmul.mubr.bf16.gmra.mxu0 %v456
      %v567 = vpop.f32.mrf.mxu0
      %v568 = vadd.f32 %v435, %v567
      %v569 = vpop.f32.mrf.mxu0
      %v570 = vpop.f32.mrf.mxu0
      %v571 = vadd.f32 %v435, %v570
      %v572 = vpop.f32.mrf.mxu0
      %573 = vdwg.mxu0
      %v574 = vmax.f32 %v544, 0.0
      %v575 = vmax.f32 %v547, 0.0
      %v576 = vmax.f32 %v552, 0.0
      %v577 = vmax.f32 %v555, 0.0
      %v578 = vmax.f32 %v560, 0.0
      %v579 = vmax.f32 %v563, 0.0
      %v580 = vmax.f32 %v568, 0.0
      %v581 = vmax.f32 %v571, 0.0
      %s582 = scalar_lea.vmem [#allocation2], 304
      %583 = vst [vmem:[%s582] sm:$0xff] %v574
      %584 = vst [vmem:[%s582 + $0x20] sm:$0xff] %v575
      %585 = vst [vmem:[%s582 + $0x40] sm:$0xff] %v576
      %586 = vst [vmem:[%s582 + $0x60] sm:$0xff] %v577
      %587 = vst [vmem:[%s582 + $0x80] sm:$0xff] %v578
      %588 = vst [vmem:[%s582 + $0xa0] sm:$0xff] %v579
      %589 = vst [vmem:[%s582 + $0xc0] sm:$0xff] %v580
      %590 = vst [vmem:[%s582 + $0xe0] sm:$0xff] %v581
      %s591 = scalar_lea.vmem %s327, 32
      %v592 = vld [vmem:[%s591] sm:$0xf]
      %v593 = vld [vmem:[%s591 + $0x4] sm:$0xf]
      %v594 = vld [vmem:[%s591 + $0x8] sm:$0xf]
      %v595 = vld [vmem:[%s591 + $0xc] sm:$0xf]
      %v596 = vld [vmem:[%s591 + $0x10] sm:$0xf]
      %v597 = vld [vmem:[%s591 + $0x14] sm:$0xf]
      %v598 = vld [vmem:[%s591 + $0x18] sm:$0xf]
      %v599 = vld [vmem:[%s591 + $0x1c] sm:$0xf]
      %v608 = vunpack.c.l.b16 %v592
      %v609 = vunpack.c.l.b16 %v593
      %v610 = vunpack.c.l.b16 %v594
      %v611 = vunpack.c.l.b16 %v595
      %v612 = vunpack.c.l.b16 %v596
      %v613 = vunpack.c.l.b16 %v597
      %v614 = vunpack.c.l.b16 %v598
      %v615 = vunpack.c.l.b16 %v599
      %v616 = vpack.c.b16 %v609, %v608
      %v617 = vpack.c.b16 %v611, %v610
      %v618 = vpack.c.b16 %v613, %v612
      %v619 = vpack.c.b16 %v615, %v614
      %624 = vmatprep.subr.bf16.mxu0 0
      %625 = vmatpush1.bf16.msra.mxu0 %v500
      %626 = vmatprep.subr.bf16.mxu0 0
      %627 = vmatpush1.bf16.msra.mxu0 %v499
      %628 = vmatprep.subr.bf16.mxu0 0
      %629 = vmatpush1.bf16.msra.mxu0 %v498
      %630 = vmatprep.subr.bf16.mxu0 0
      %631 = vmatpush1.bf16.msra.mxu0 %v497
      %632 = vmatprep.subr.bf16.mxu0 0
      %633 = vmatpush1.bf16.msra.mxu0 %v496
      %634 = vmatprep.subr.bf16.mxu0 0
      %635 = vmatpush1.bf16.msra.mxu0 %v495
      %636 = vmatprep.subr.bf16.mxu0 0
      %637 = vmatpush1.bf16.msra.mxu0 %v494
      %638 = vmatprep.subr.bf16.mxu0 0
      %639 = vmatpush1.bf16.msra.mxu0 %v493
      %640 = vmatprep.subr.bf16.mxu0 0
      %641 = vmatpush2.bf16.msra.mxu0 0
      %642 = vmatprep.subr.bf16.mxu0 0
      %643 = vmatpush2.bf16.msra.mxu0 0
      %644 = vmatprep.subr.bf16.mxu0 0
      %645 = vmatpush2.bf16.msra.mxu0 0
      %646 = vmatprep.subr.bf16.mxu0 0
      %647 = vmatpush2.bf16.msra.mxu0 0
      %648 = vmatprep.subr.bf16.mxu0 0
      %649 = vmatpush2.bf16.msra.mxu0 0
      %650 = vmatprep.subr.bf16.mxu0 0
      %651 = vmatpush2.bf16.msra.mxu0 0
      %652 = vmatprep.subr.bf16.mxu0 0
      %653 = vmatpush2.bf16.msra.mxu0 0
      %654 = vmatprep.subr.bf16.mxu0 0
      %655 = vmatpush2.bf16.msra.mxu0 0
      %656 = vmatprep.mubr.bf16.mxu0 0
      %657 = vmatmul.mubr.bf16.gmra.mxu0 %v616
      %v658 = vpop.f32.mrf.mxu0
      %v659 = vadd.f32 %v435, %v658
      %v660 = vpop.f32.mrf.mxu0
      %v661 = vpop.f32.mrf.mxu0
      %v662 = vadd.f32 %v435, %v661
      %v663 = vpop.f32.mrf.mxu0
      %664 = vmatprep.mubr.bf16.mxu0 0
      %665 = vmatmul.mubr.bf16.gmra.mxu0 %v617
      %v666 = vpop.f32.mrf.mxu0
      %v667 = vadd.f32 %v435, %v666
      %v668 = vpop.f32.mrf.mxu0
      %v669 = vpop.f32.mrf.mxu0
      %v670 = vadd.f32 %v435, %v669
      %v671 = vpop.f32.mrf.mxu0
      %672 = vmatprep.mubr.bf16.mxu0 0
      %673 = vmatmul.mubr.bf16.gmra.mxu0 %v618
      %v674 = vpop.f32.mrf.mxu0
      %v675 = vadd.f32 %v435, %v674
      %v676 = vpop.f32.mrf.mxu0
      %v677 = vpop.f32.mrf.mxu0
      %v678 = vadd.f32 %v435, %v677
      %v679 = vpop.f32.mrf.mxu0
      %680 = vmatprep.mubr.bf16.mxu0 0
      %681 = vmatmul.mubr.bf16.gmra.mxu0 %v619
      %v682 = vpop.f32.mrf.mxu0
      %v683 = vadd.f32 %v435, %v682
      %v684 = vpop.f32.mrf.mxu0
      %v685 = vpop.f32.mrf.mxu0
      %v686 = vadd.f32 %v435, %v685
      %v687 = vpop.f32.mrf.mxu0
      %688 = vdwg.mxu0
      %v689 = vmax.f32 %v659, 0.0
      %v690 = vmax.f32 %v662, 0.0
      %v691 = vmax.f32 %v667, 0.0
      %v692 = vmax.f32 %v670, 0.0
      %v693 = vmax.f32 %v675, 0.0
      %v694 = vmax.f32 %v678, 0.0
      %v695 = vmax.f32 %v683, 0.0
      %v696 = vmax.f32 %v686, 0.0
      %s697 = scalar_lea.vmem [#allocation2], 288
      %698 = vst [vmem:[%s697 + $0x1] sm:$0xff] %v689
      %699 = vst [vmem:[%s697 + $0x21] sm:$0xff] %v690
      %700 = vst [vmem:[%s697 + $0x41] sm:$0xff] %v691
      %701 = vst [vmem:[%s697 + $0x61] sm:$0xff] %v692
      %702 = vst [vmem:[%s697 + $0x81] sm:$0xff] %v693
      %703 = vst [vmem:[%s697 + $0xa1] sm:$0xff] %v694
      %704 = vst [vmem:[%s697 + $0xc1] sm:$0xff] %v695
      %705 = vst [vmem:[%s697 + $0xe1] sm:$0xff] %v696
      %s706 = scalar_lea.vmem %s327, 64
      %v707 = vld [vmem:[%s706] sm:$0xf]
      %v708 = vld [vmem:[%s706 + $0x4] sm:$0xf]
      %v709 = vld [vmem:[%s706 + $0x8] sm:$0xf]
      %v710 = vld [vmem:[%s706 + $0xc] sm:$0xf]
      %v711 = vld [vmem:[%s706 + $0x10] sm:$0xf]
      %v712 = vld [vmem:[%s706 + $0x14] sm:$0xf]
      %v713 = vld [vmem:[%s706 + $0x18] sm:$0xf]
      %v714 = vld [vmem:[%s706 + $0x1c] sm:$0xf]
      %v723 = vunpack.c.l.b16 %v707
      %v724 = vunpack.c.l.b16 %v708
      %v725 = vunpack.c.l.b16 %v709
      %v726 = vunpack.c.l.b16 %v710
      %v727 = vunpack.c.l.b16 %v711
      %v728 = vunpack.c.l.b16 %v712
      %v729 = vunpack.c.l.b16 %v713
      %v730 = vunpack.c.l.b16 %v714
      %v731 = vpack.c.b16 %v724, %v723
      %v732 = vpack.c.b16 %v726, %v725
      %v733 = vpack.c.b16 %v728, %v727
      %v734 = vpack.c.b16 %v730, %v729
      %739 = vmatprep.subr.bf16.mxu0 0
      %740 = vmatpush1.bf16.msra.mxu0 %v500
      %741 = vmatprep.subr.bf16.mxu0 0
      %742 = vmatpush1.bf16.msra.mxu0 %v499
      %743 = vmatprep.subr.bf16.mxu0 0
      %744 = vmatpush1.bf16.msra.mxu0 %v498
      %745 = vmatprep.subr.bf16.mxu0 0
      %746 = vmatpush1.bf16.msra.mxu0 %v497
      %747 = vmatprep.subr.bf16.mxu0 0
      %748 = vmatpush1.bf16.msra.mxu0 %v496
      %749 = vmatprep.subr.bf16.mxu0 0
      %750 = vmatpush1.bf16.msra.mxu0 %v495
      %751 = vmatprep.subr.bf16.mxu0 0
      %752 = vmatpush1.bf16.msra.mxu0 %v494
      %753 = vmatprep.subr.bf16.mxu0 0
      %754 = vmatpush1.bf16.msra.mxu0 %v493
      %755 = vmatprep.subr.bf16.mxu0 0
      %756 = vmatpush2.bf16.msra.mxu0 0
      %757 = vmatprep.subr.bf16.mxu0 0
      %758 = vmatpush2.bf16.msra.mxu0 0
      %759 = vmatprep.subr.bf16.mxu0 0
      %760 = vmatpush2.bf16.msra.mxu0 0
      %761 = vmatprep.subr.bf16.mxu0 0
      %762 = vmatpush2.bf16.msra.mxu0 0
      %763 = vmatprep.subr.bf16.mxu0 0
      %764 = vmatpush2.bf16.msra.mxu0 0
      %765 = vmatprep.subr.bf16.mxu0 0
      %766 = vmatpush2.bf16.msra.mxu0 0
      %767 = vmatprep.subr.bf16.mxu0 0
      %768 = vmatpush2.bf16.msra.mxu0 0
      %769 = vmatprep.subr.bf16.mxu0 0
      %770 = vmatpush2.bf16.msra.mxu0 0
      %771 = vmatprep.mubr.bf16.mxu0 0
      %772 = vmatmul.mubr.bf16.gmra.mxu0 %v731
      %v773 = vpop.f32.mrf.mxu0
      %v774 = vadd.f32 %v435, %v773
      %v775 = vpop.f32.mrf.mxu0
      %v776 = vpop.f32.mrf.mxu0
      %v777 = vadd.f32 %v435, %v776
      %v778 = vpop.f32.mrf.mxu0
      %779 = vmatprep.mubr.bf16.mxu0 0
      %780 = vmatmul.mubr.bf16.gmra.mxu0 %v732
      %v781 = vpop.f32.mrf.mxu0
      %v782 = vadd.f32 %v435, %v781
      %v783 = vpop.f32.mrf.mxu0
      %v784 = vpop.f32.mrf.mxu0
      %v785 = vadd.f32 %v435, %v784
      %v786 = vpop.f32.mrf.mxu0
      %787 = vmatprep.mubr.bf16.mxu0 0
      %788 = vmatmul.mubr.bf16.gmra.mxu0 %v733
      %v789 = vpop.f32.mrf.mxu0
      %v790 = vadd.f32 %v435, %v789
      %v791 = vpop.f32.mrf.mxu0
      %v792 = vpop.f32.mrf.mxu0
      %v793 = vadd.f32 %v435, %v792
      %v794 = vpop.f32.mrf.mxu0
      %795 = vmatprep.mubr.bf16.mxu0 0
      %796 = vmatmul.mubr.bf16.gmra.mxu0 %v734
      %v797 = vpop.f32.mrf.mxu0
      %v798 = vadd.f32 %v435, %v797
      %v799 = vpop.f32.mrf.mxu0
      %v800 = vpop.f32.mrf.mxu0
      %v801 = vadd.f32 %v435, %v800
      %v802 = vpop.f32.mrf.mxu0
      %803 = vdwg.mxu0
      %v804 = vmax.f32 %v774, 0.0
      %v805 = vmax.f32 %v777, 0.0
      %v806 = vmax.f32 %v782, 0.0
      %v807 = vmax.f32 %v785, 0.0
      %v808 = vmax.f32 %v790, 0.0
      %v809 = vmax.f32 %v793, 0.0
      %v810 = vmax.f32 %v798, 0.0
      %v811 = vmax.f32 %v801, 0.0
      %s812 = scalar_lea.vmem [#allocation2], 48
      %813 = vst [vmem:[%s812] sm:$0xff] %v804
      %814 = vst [vmem:[%s812 + $0x20] sm:$0xff] %v805
      %815 = vst [vmem:[%s812 + $0x40] sm:$0xff] %v806
      %816 = vst [vmem:[%s812 + $0x60] sm:$0xff] %v807
      %817 = vst [vmem:[%s812 + $0x80] sm:$0xff] %v808
      %818 = vst [vmem:[%s812 + $0xa0] sm:$0xff] %v809
      %819 = vst [vmem:[%s812 + $0xc0] sm:$0xff] %v810
      %820 = vst [vmem:[%s812 + $0xe0] sm:$0xff] %v811
      %s821 = scalar_lea.vmem %s327, 96
      %v822 = vld [vmem:[%s821] sm:$0xf]
      %v823 = vld [vmem:[%s821 + $0x4] sm:$0xf]
      %v824 = vld [vmem:[%s821 + $0x8] sm:$0xf]
      %v825 = vld [vmem:[%s821 + $0xc] sm:$0xf]
      %v826 = vld [vmem:[%s821 + $0x10] sm:$0xf]
      %v827 = vld [vmem:[%s821 + $0x14] sm:$0xf]
      %v828 = vld [vmem:[%s821 + $0x18] sm:$0xf]
      %v829 = vld [vmem:[%s821 + $0x1c] sm:$0xf]
      %v838 = vunpack.c.l.b16 %v822
      %v839 = vunpack.c.l.b16 %v823
      %v840 = vunpack.c.l.b16 %v824
      %v841 = vunpack.c.l.b16 %v825
      %v842 = vunpack.c.l.b16 %v826
      %v843 = vunpack.c.l.b16 %v827
      %v844 = vunpack.c.l.b16 %v828
      %v845 = vunpack.c.l.b16 %v829
      %v846 = vpack.c.b16 %v839, %v838
      %v847 = vpack.c.b16 %v841, %v840
      %v848 = vpack.c.b16 %v843, %v842
      %v849 = vpack.c.b16 %v845, %v844
      %854 = vmatprep.subr.bf16.mxu0 0
      %855 = vmatpush1.bf16.msra.mxu0 %v500
      %856 = vmatprep.subr.bf16.mxu0 0
      %857 = vmatpush1.bf16.msra.mxu0 %v499
      %858 = vmatprep.subr.bf16.mxu0 0
      %859 = vmatpush1.bf16.msra.mxu0 %v498
      %860 = vmatprep.subr.bf16.mxu0 0
      %861 = vmatpush1.bf16.msra.mxu0 %v497
      %862 = vmatprep.subr.bf16.mxu0 0
      %863 = vmatpush1.bf16.msra.mxu0 %v496
      %864 = vmatprep.subr.bf16.mxu0 0
      %865 = vmatpush1.bf16.msra.mxu0 %v495
      %866 = vmatprep.subr.bf16.mxu0 0
      %867 = vmatpush1.bf16.msra.mxu0 %v494
      %868 = vmatprep.subr.bf16.mxu0 0
      %869 = vmatpush1.bf16.msra.mxu0 %v493
      %870 = vmatprep.subr.bf16.mxu0 0
      %871 = vmatpush2.bf16.msra.mxu0 0
      %872 = vmatprep.subr.bf16.mxu0 0
      %873 = vmatpush2.bf16.msra.mxu0 0
      %874 = vmatprep.subr.bf16.mxu0 0
      %875 = vmatpush2.bf16.msra.mxu0 0
      %876 = vmatprep.subr.bf16.mxu0 0
      %877 = vmatpush2.bf16.msra.mxu0 0
      %878 = vmatprep.subr.bf16.mxu0 0
      %879 = vmatpush2.bf16.msra.mxu0 0
      %880 = vmatprep.subr.bf16.mxu0 0
      %881 = vmatpush2.bf16.msra.mxu0 0
      %882 = vmatprep.subr.bf16.mxu0 0
      %883 = vmatpush2.bf16.msra.mxu0 0
      %884 = vmatprep.subr.bf16.mxu0 0
      %885 = vmatpush2.bf16.msra.mxu0 0
      %886 = vmatprep.mubr.bf16.mxu0 0
      %887 = vmatmul.mubr.bf16.gmra.mxu0 %v846
      %v888 = vpop.f32.mrf.mxu0
      %v889 = vadd.f32 %v435, %v888
      %v890 = vpop.f32.mrf.mxu0
      %v891 = vpop.f32.mrf.mxu0
      %v892 = vadd.f32 %v435, %v891
      %v893 = vpop.f32.mrf.mxu0
      %894 = vmatprep.mubr.bf16.mxu0 0
      %895 = vmatmul.mubr.bf16.gmra.mxu0 %v847
      %v896 = vpop.f32.mrf.mxu0
      %v897 = vadd.f32 %v435, %v896
      %v898 = vpop.f32.mrf.mxu0
      %v899 = vpop.f32.mrf.mxu0
      %v900 = vadd.f32 %v435, %v899
      %v901 = vpop.f32.mrf.mxu0
      %902 = vmatprep.mubr.bf16.mxu0 0
      %903 = vmatmul.mubr.bf16.gmra.mxu0 %v848
      %v904 = vpop.f32.mrf.mxu0
      %v905 = vadd.f32 %v435, %v904
      %v906 = vpop.f32.mrf.mxu0
      %v907 = vpop.f32.mrf.mxu0
      %v908 = vadd.f32 %v435, %v907
      %v909 = vpop.f32.mrf.mxu0
      %910 = vmatprep.mubr.bf16.mxu0 0
      %911 = vmatmul.mubr.bf16.gmra.mxu0 %v849
      %v912 = vpop.f32.mrf.mxu0
      %v913 = vadd.f32 %v435, %v912
      %v914 = vpop.f32.mrf.mxu0
      %v915 = vpop.f32.mrf.mxu0
      %v916 = vadd.f32 %v435, %v915
      %v917 = vpop.f32.mrf.mxu0
      %918 = vdwg.mxu0
      %v919 = vmax.f32 %v889, 0.0
      %v920 = vmax.f32 %v892, 0.0
      %v921 = vmax.f32 %v897, 0.0
      %v922 = vmax.f32 %v900, 0.0
      %v923 = vmax.f32 %v905, 0.0
      %v924 = vmax.f32 %v908, 0.0
      %v925 = vmax.f32 %v913, 0.0
      %v926 = vmax.f32 %v916, 0.0
      %s927 = scalar_lea.vmem [#allocation2], 32
      %928 = vst [vmem:[%s927 + $0x1] sm:$0xff] %v919
      %929 = vst [vmem:[%s927 + $0x21] sm:$0xff] %v920
      %930 = vst [vmem:[%s927 + $0x41] sm:$0xff] %v921
      %931 = vst [vmem:[%s927 + $0x61] sm:$0xff] %v922
      %932 = vst [vmem:[%s927 + $0x81] sm:$0xff] %v923
      %933 = vst [vmem:[%s927 + $0xa1] sm:$0xff] %v924
      %934 = vst [vmem:[%s927 + $0xc1] sm:$0xff] %v925
      %935 = vst [vmem:[%s927 + $0xe1] sm:$0xff] %v926
      %v936 = vld [vmem:[#allocation2] sm:$0xff]
      %v937 = vld [vmem:[#allocation2 + $0x20] sm:$0xff]
      %v938 = vld [vmem:[#allocation2 + $0x40] sm:$0xff]
      %v939 = vld [vmem:[#allocation2 + $0x60] sm:$0xff]
      %v940 = vld [vmem:[#allocation2 + $0x80] sm:$0xff]
      %v941 = vld [vmem:[#allocation2 + $0xa0] sm:$0xff]
      %v942 = vld [vmem:[#allocation2 + $0xc0] sm:$0xff]
      %v943 = vld [vmem:[#allocation2 + $0xe0] sm:$0xff]
      %v944 = vpack.c.bf16 %v937, %v936
      %v945 = vpack.c.bf16 %v939, %v938
      %v946 = vpack.c.bf16 %v941, %v940
      %v947 = vpack.c.bf16 %v943, %v942
      %v948 = vld [vmem:[%s3] sm:$0xf]
      %v949 = vld [vmem:[%s3 + $0x4] sm:$0xf]
      %v950 = vld [vmem:[%s3 + $0x8] sm:$0xf]
      %v951 = vld [vmem:[%s3 + $0xc] sm:$0xf]
      %v952 = vld [vmem:[%s3 + $0x10] sm:$0xf]
      %v953 = vld [vmem:[%s3 + $0x14] sm:$0xf]
      %v954 = vld [vmem:[%s3 + $0x18] sm:$0xf]
      %v955 = vld [vmem:[%s3 + $0x1c] sm:$0xf]
      %v956 = vld [vmem:[%s3 + $0x20] sm:$0xf]
      %v957 = vld [vmem:[%s3 + $0x24] sm:$0xf]
      %v958 = vld [vmem:[%s3 + $0x28] sm:$0xf]
      %v959 = vld [vmem:[%s3 + $0x2c] sm:$0xf]
      %v960 = vld [vmem:[%s3 + $0x30] sm:$0xf]
      %v961 = vld [vmem:[%s3 + $0x34] sm:$0xf]
      %v962 = vld [vmem:[%s3 + $0x38] sm:$0xf]
      %v963 = vld [vmem:[%s3 + $0x3c] sm:$0xf]
      %s964 = scalar_lea.vmem [#allocation2], 16
      %v965 = vld [vmem:[%s964] sm:$0xff]
      %v966 = vld [vmem:[%s964 + $0x20] sm:$0xff]
      %v967 = vld [vmem:[%s964 + $0x40] sm:$0xff]
      %v968 = vld [vmem:[%s964 + $0x60] sm:$0xff]
      %v969 = vld [vmem:[%s964 + $0x80] sm:$0xff]
      %v970 = vld [vmem:[%s964 + $0xa0] sm:$0xff]
      %v971 = vld [vmem:[%s964 + $0xc0] sm:$0xff]
      %v972 = vld [vmem:[%s964 + $0xe0] sm:$0xff]
      %v973 = vpack.c.bf16 %v966, %v965
      %v974 = vpack.c.bf16 %v968, %v967
      %v975 = vpack.c.bf16 %v970, %v969
      %v976 = vpack.c.bf16 %v972, %v971
      %s977 = scalar_lea.vmem %s3, 64
      %v978 = vld [vmem:[%s977] sm:$0xf]
      %v979 = vld [vmem:[%s977 + $0x4] sm:$0xf]
      %v980 = vld [vmem:[%s977 + $0x8] sm:$0xf]
      %v981 = vld [vmem:[%s977 + $0xc] sm:$0xf]
      %v982 = vld [vmem:[%s977 + $0x10] sm:$0xf]
      %v983 = vld [vmem:[%s977 + $0x14] sm:$0xf]
      %v984 = vld [vmem:[%s977 + $0x18] sm:$0xf]
      %v985 = vld [vmem:[%s977 + $0x1c] sm:$0xf]
      %v986 = vld [vmem:[%s977 + $0x20] sm:$0xf]
      %v987 = vld [vmem:[%s977 + $0x24] sm:$0xf]
      %v988 = vld [vmem:[%s977 + $0x28] sm:$0xf]
      %v989 = vld [vmem:[%s977 + $0x2c] sm:$0xf]
      %v990 = vld [vmem:[%s977 + $0x30] sm:$0xf]
      %v991 = vld [vmem:[%s977 + $0x34] sm:$0xf]
      %v992 = vld [vmem:[%s977 + $0x38] sm:$0xf]
      %v993 = vld [vmem:[%s977 + $0x3c] sm:$0xf]
      %v1010 = vunpack.c.l.b16 %v978
      %v1011 = vunpack.c.l.b16 %v979
      %v1012 = vunpack.c.l.b16 %v980
      %v1013 = vunpack.c.l.b16 %v981
      %v1014 = vunpack.c.l.b16 %v982
      %v1015 = vunpack.c.l.b16 %v983
      %v1016 = vunpack.c.l.b16 %v984
      %v1017 = vunpack.c.l.b16 %v985
      %v1018 = vunpack.c.l.b16 %v986
      %v1019 = vunpack.c.l.b16 %v987
      %v1020 = vunpack.c.l.b16 %v988
      %v1021 = vunpack.c.l.b16 %v989
      %v1022 = vunpack.c.l.b16 %v990
      %v1023 = vunpack.c.l.b16 %v991
      %v1024 = vunpack.c.l.b16 %v992
      %v1025 = vunpack.c.l.b16 %v993
      %v1026 = vpack.c.b16 %v1011, %v1010
      %v1027 = vpack.c.b16 %v1013, %v1012
      %v1028 = vpack.c.b16 %v1015, %v1014
      %v1029 = vpack.c.b16 %v1017, %v1016
      %v1030 = vpack.c.b16 %v1019, %v1018
      %v1031 = vpack.c.b16 %v1021, %v1020
      %v1032 = vpack.c.b16 %v1023, %v1022
      %v1033 = vpack.c.b16 %v1025, %v1024
      %1042 = vmatprep.subr.bf16.mxu0 0
      %1043 = vmatpush1.bf16.msra.mxu0 %v1033
      %1044 = vmatprep.subr.bf16.mxu0 0
      %1045 = vmatpush1.bf16.msra.mxu0 %v1032
      %1046 = vmatprep.subr.bf16.mxu0 0
      %1047 = vmatpush1.bf16.msra.mxu0 %v1031
      %1048 = vmatprep.subr.bf16.mxu0 0
      %1049 = vmatpush1.bf16.msra.mxu0 %v1030
      %1050 = vmatprep.subr.bf16.mxu0 0
      %1051 = vmatpush1.bf16.msra.mxu0 %v1029
      %1052 = vmatprep.subr.bf16.mxu0 0
      %1053 = vmatpush1.bf16.msra.mxu0 %v1028
      %1054 = vmatprep.subr.bf16.mxu0 0
      %1055 = vmatpush1.bf16.msra.mxu0 %v1027
      %1056 = vmatprep.subr.bf16.mxu0 0
      %1057 = vmatpush1.bf16.msra.mxu0 %v1026
      %1058 = vmatprep.subr.bf16.mxu0 0
      %1059 = vmatpush2.bf16.msra.mxu0 0
      %1060 = vmatprep.subr.bf16.mxu0 0
      %1061 = vmatpush2.bf16.msra.mxu0 0
      %1062 = vmatprep.subr.bf16.mxu0 0
      %1063 = vmatpush2.bf16.msra.mxu0 0
      %1064 = vmatprep.subr.bf16.mxu0 0
      %1065 = vmatpush2.bf16.msra.mxu0 0
      %1066 = vmatprep.subr.bf16.mxu0 0
      %1067 = vmatpush2.bf16.msra.mxu0 0
      %1068 = vmatprep.subr.bf16.mxu0 0
      %1069 = vmatpush2.bf16.msra.mxu0 0
      %1070 = vmatprep.subr.bf16.mxu0 0
      %1071 = vmatpush2.bf16.msra.mxu0 0
      %1072 = vmatprep.subr.bf16.mxu0 0
      %1073 = vmatpush2.bf16.msra.mxu0 0
      %1074 = vmatprep.mubr.bf16.mxu0 0
      %1075 = vmatmul.mubr.bf16.gmra.mxu0 %v973
      %v1076 = vpop.f32.mrf.mxu0
      %v1077 = vadd.f32 0.0, %v1076
      %v1078 = vpop.f32.mrf.mxu0
      %v1079 = vpop.f32.mrf.mxu0
      %v1080 = vadd.f32 0.0, %v1079
      %v1081 = vpop.f32.mrf.mxu0
      %1082 = vmatprep.mubr.bf16.mxu0 0
      %1083 = vmatmul.mubr.bf16.gmra.mxu0 %v974
      %v1084 = vpop.f32.mrf.mxu0
      %v1085 = vadd.f32 0.0, %v1084
      %v1086 = vpop.f32.mrf.mxu0
      %v1087 = vpop.f32.mrf.mxu0
      %v1088 = vadd.f32 0.0, %v1087
      %v1089 = vpop.f32.mrf.mxu0
      %1090 = vmatprep.mubr.bf16.mxu0 0
      %1091 = vmatmul.mubr.bf16.gmra.mxu0 %v975
      %v1092 = vpop.f32.mrf.mxu0
      %v1093 = vadd.f32 0.0, %v1092
      %v1094 = vpop.f32.mrf.mxu0
      %v1095 = vpop.f32.mrf.mxu0
      %v1096 = vadd.f32 0.0, %v1095
      %v1097 = vpop.f32.mrf.mxu0
      %1098 = vmatprep.mubr.bf16.mxu0 0
      %1099 = vmatmul.mubr.bf16.gmra.mxu0 %v976
      %v1100 = vpop.f32.mrf.mxu0
      %v1101 = vadd.f32 0.0, %v1100
      %v1102 = vpop.f32.mrf.mxu0
      %v1103 = vpop.f32.mrf.mxu0
      %v1104 = vadd.f32 0.0, %v1103
      %v1105 = vpop.f32.mrf.mxu0
      %1106 = vdwg.mxu0
      %v1123 = vunpack.c.l.b16 %v948
      %v1124 = vunpack.c.l.b16 %v949
      %v1125 = vunpack.c.l.b16 %v950
      %v1126 = vunpack.c.l.b16 %v951
      %v1127 = vunpack.c.l.b16 %v952
      %v1128 = vunpack.c.l.b16 %v953
      %v1129 = vunpack.c.l.b16 %v954
      %v1130 = vunpack.c.l.b16 %v955
      %v1131 = vunpack.c.l.b16 %v956
      %v1132 = vunpack.c.l.b16 %v957
      %v1133 = vunpack.c.l.b16 %v958
      %v1134 = vunpack.c.l.b16 %v959
      %v1135 = vunpack.c.l.b16 %v960
      %v1136 = vunpack.c.l.b16 %v961
      %v1137 = vunpack.c.l.b16 %v962
      %v1138 = vunpack.c.l.b16 %v963
      %v1139 = vpack.c.b16 %v1124, %v1123
      %v1140 = vpack.c.b16 %v1126, %v1125
      %v1141 = vpack.c.b16 %v1128, %v1127
      %v1142 = vpack.c.b16 %v1130, %v1129
      %v1143 = vpack.c.b16 %v1132, %v1131
      %v1144 = vpack.c.b16 %v1134, %v1133
      %v1145 = vpack.c.b16 %v1136, %v1135
      %v1146 = vpack.c.b16 %v1138, %v1137
      %1155 = vmatprep.subr.bf16.mxu0 0
      %1156 = vmatpush1.bf16.msra.mxu0 %v1146
      %1157 = vmatprep.subr.bf16.mxu0 0
      %1158 = vmatpush1.bf16.msra.mxu0 %v1145
      %1159 = vmatprep.subr.bf16.mxu0 0
      %1160 = vmatpush1.bf16.msra.mxu0 %v1144
      %1161 = vmatprep.subr.bf16.mxu0 0
      %1162 = vmatpush1.bf16.msra.mxu0 %v1143
      %1163 = vmatprep.subr.bf16.mxu0 0
      %1164 = vmatpush1.bf16.msra.mxu0 %v1142
      %1165 = vmatprep.subr.bf16.mxu0 0
      %1166 = vmatpush1.bf16.msra.mxu0 %v1141
      %1167 = vmatprep.subr.bf16.mxu0 0
      %1168 = vmatpush1.bf16.msra.mxu0 %v1140
      %1169 = vmatprep.subr.bf16.mxu0 0
      %1170 = vmatpush1.bf16.msra.mxu0 %v1139
      %1171 = vmatprep.subr.bf16.mxu0 0
      %1172 = vmatpush2.bf16.msra.mxu0 0
      %1173 = vmatprep.subr.bf16.mxu0 0
      %1174 = vmatpush2.bf16.msra.mxu0 0
      %1175 = vmatprep.subr.bf16.mxu0 0
      %1176 = vmatpush2.bf16.msra.mxu0 0
      %1177 = vmatprep.subr.bf16.mxu0 0
      %1178 = vmatpush2.bf16.msra.mxu0 0
      %1179 = vmatprep.subr.bf16.mxu0 0
      %1180 = vmatpush2.bf16.msra.mxu0 0
      %1181 = vmatprep.subr.bf16.mxu0 0
      %1182 = vmatpush2.bf16.msra.mxu0 0
      %1183 = vmatprep.subr.bf16.mxu0 0
      %1184 = vmatpush2.bf16.msra.mxu0 0
      %1185 = vmatprep.subr.bf16.mxu0 0
      %1186 = vmatpush2.bf16.msra.mxu0 0
      %1187 = vmatprep.mubr.bf16.mxu0 0
      %1188 = vmatmul.mubr.bf16.gmra.mxu0 %v944
      %v1189 = vpop.f32.mrf.mxu0
      %v1190 = vadd.f32 %v1077, %v1189
      %v1191 = vpop.f32.mrf.mxu0
      %v1192 = vpop.f32.mrf.mxu0
      %v1193 = vadd.f32 %v1080, %v1192
      %v1194 = vpop.f32.mrf.mxu0
      %1195 = vmatprep.mubr.bf16.mxu0 0
      %1196 = vmatmul.mubr.bf16.gmra.mxu0 %v945
      %v1197 = vpop.f32.mrf.mxu0
      %v1198 = vadd.f32 %v1085, %v1197
      %v1199 = vpop.f32.mrf.mxu0
      %v1200 = vpop.f32.mrf.mxu0
      %v1201 = vadd.f32 %v1088, %v1200
      %v1202 = vpop.f32.mrf.mxu0
      %1203 = vmatprep.mubr.bf16.mxu0 0
      %1204 = vmatmul.mubr.bf16.gmra.mxu0 %v946
      %v1205 = vpop.f32.mrf.mxu0
      %v1206 = vadd.f32 %v1093, %v1205
      %v1207 = vpop.f32.mrf.mxu0
      %v1208 = vpop.f32.mrf.mxu0
      %v1209 = vadd.f32 %v1096, %v1208
      %v1210 = vpop.f32.mrf.mxu0
      %1211 = vmatprep.mubr.bf16.mxu0 0
      %1212 = vmatmul.mubr.bf16.gmra.mxu0 %v947
      %v1213 = vpop.f32.mrf.mxu0
      %v1214 = vadd.f32 %v1101, %v1213
      %v1215 = vpop.f32.mrf.mxu0
      %v1216 = vpop.f32.mrf.mxu0
      %v1217 = vadd.f32 %v1104, %v1216
      %v1218 = vpop.f32.mrf.mxu0
      %1219 = vdwg.mxu0
      %v1220 = vld [vmem:[#allocation2 + $0x1] sm:$0xff]
      %v1221 = vld [vmem:[#allocation2 + $0x21] sm:$0xff]
      %v1222 = vld [vmem:[#allocation2 + $0x41] sm:$0xff]
      %v1223 = vld [vmem:[#allocation2 + $0x61] sm:$0xff]
      %v1224 = vld [vmem:[#allocation2 + $0x81] sm:$0xff]
      %v1225 = vld [vmem:[#allocation2 + $0xa1] sm:$0xff]
      %v1226 = vld [vmem:[#allocation2 + $0xc1] sm:$0xff]
      %v1227 = vld [vmem:[#allocation2 + $0xe1] sm:$0xff]
      %v1228 = vpack.c.bf16 %v1221, %v1220
      %v1229 = vpack.c.bf16 %v1223, %v1222
      %v1230 = vpack.c.bf16 %v1225, %v1224
      %v1231 = vpack.c.bf16 %v1227, %v1226
      %s1232 = scalar_lea.vmem %s3, 128
      %v1233 = vld [vmem:[%s1232] sm:$0xf]
      %v1234 = vld [vmem:[%s1232 + $0x4] sm:$0xf]
      %v1235 = vld [vmem:[%s1232 + $0x8] sm:$0xf]
      %v1236 = vld [vmem:[%s1232 + $0xc] sm:$0xf]
      %v1237 = vld [vmem:[%s1232 + $0x10] sm:$0xf]
      %v1238 = vld [vmem:[%s1232 + $0x14] sm:$0xf]
      %v1239 = vld [vmem:[%s1232 + $0x18] sm:$0xf]
      %v1240 = vld [vmem:[%s1232 + $0x1c] sm:$0xf]
      %v1241 = vld [vmem:[%s1232 + $0x20] sm:$0xf]
      %v1242 = vld [vmem:[%s1232 + $0x24] sm:$0xf]
      %v1243 = vld [vmem:[%s1232 + $0x28] sm:$0xf]
      %v1244 = vld [vmem:[%s1232 + $0x2c] sm:$0xf]
      %v1245 = vld [vmem:[%s1232 + $0x30] sm:$0xf]
      %v1246 = vld [vmem:[%s1232 + $0x34] sm:$0xf]
      %v1247 = vld [vmem:[%s1232 + $0x38] sm:$0xf]
      %v1248 = vld [vmem:[%s1232 + $0x3c] sm:$0xf]
      %v1265 = vunpack.c.l.b16 %v1233
      %v1266 = vunpack.c.l.b16 %v1234
      %v1267 = vunpack.c.l.b16 %v1235
      %v1268 = vunpack.c.l.b16 %v1236
      %v1269 = vunpack.c.l.b16 %v1237
      %v1270 = vunpack.c.l.b16 %v1238
      %v1271 = vunpack.c.l.b16 %v1239
      %v1272 = vunpack.c.l.b16 %v1240
      %v1273 = vunpack.c.l.b16 %v1241
      %v1274 = vunpack.c.l.b16 %v1242
      %v1275 = vunpack.c.l.b16 %v1243
      %v1276 = vunpack.c.l.b16 %v1244
      %v1277 = vunpack.c.l.b16 %v1245
      %v1278 = vunpack.c.l.b16 %v1246
      %v1279 = vunpack.c.l.b16 %v1247
      %v1280 = vunpack.c.l.b16 %v1248
      %v1281 = vpack.c.b16 %v1266, %v1265
      %v1282 = vpack.c.b16 %v1268, %v1267
      %v1283 = vpack.c.b16 %v1270, %v1269
      %v1284 = vpack.c.b16 %v1272, %v1271
      %v1285 = vpack.c.b16 %v1274, %v1273
      %v1286 = vpack.c.b16 %v1276, %v1275
      %v1287 = vpack.c.b16 %v1278, %v1277
      %v1288 = vpack.c.b16 %v1280, %v1279
      %1297 = vmatprep.subr.bf16.mxu0 0
      %1298 = vmatpush1.bf16.msra.mxu0 %v1288
      %1299 = vmatprep.subr.bf16.mxu0 0
      %1300 = vmatpush1.bf16.msra.mxu0 %v1287
      %1301 = vmatprep.subr.bf16.mxu0 0
      %1302 = vmatpush1.bf16.msra.mxu0 %v1286
      %1303 = vmatprep.subr.bf16.mxu0 0
      %1304 = vmatpush1.bf16.msra.mxu0 %v1285
      %1305 = vmatprep.subr.bf16.mxu0 0
      %1306 = vmatpush1.bf16.msra.mxu0 %v1284
      %1307 = vmatprep.subr.bf16.mxu0 0
      %1308 = vmatpush1.bf16.msra.mxu0 %v1283
      %1309 = vmatprep.subr.bf16.mxu0 0
      %1310 = vmatpush1.bf16.msra.mxu0 %v1282
      %1311 = vmatprep.subr.bf16.mxu0 0
      %1312 = vmatpush1.bf16.msra.mxu0 %v1281
      %1313 = vmatprep.subr.bf16.mxu0 0
      %1314 = vmatpush2.bf16.msra.mxu0 0
      %1315 = vmatprep.subr.bf16.mxu0 0
      %1316 = vmatpush2.bf16.msra.mxu0 0
      %1317 = vmatprep.subr.bf16.mxu0 0
      %1318 = vmatpush2.bf16.msra.mxu0 0
      %1319 = vmatprep.subr.bf16.mxu0 0
      %1320 = vmatpush2.bf16.msra.mxu0 0
      %1321 = vmatprep.subr.bf16.mxu0 0
      %1322 = vmatpush2.bf16.msra.mxu0 0
      %1323 = vmatprep.subr.bf16.mxu0 0
      %1324 = vmatpush2.bf16.msra.mxu0 0
      %1325 = vmatprep.subr.bf16.mxu0 0
      %1326 = vmatpush2.bf16.msra.mxu0 0
      %1327 = vmatprep.subr.bf16.mxu0 0
      %1328 = vmatpush2.bf16.msra.mxu0 0
      %1329 = vmatprep.mubr.bf16.mxu0 0
      %1330 = vmatmul.mubr.bf16.gmra.mxu0 %v1228
      %v1331 = vpop.f32.mrf.mxu0
      %v1332 = vadd.f32 0.0, %v1331
      %v1333 = vpop.f32.mrf.mxu0
      %v1334 = vpop.f32.mrf.mxu0
      %v1335 = vadd.f32 0.0, %v1334
      %v1336 = vpop.f32.mrf.mxu0
      %1337 = vmatprep.mubr.bf16.mxu0 0
      %1338 = vmatmul.mubr.bf16.gmra.mxu0 %v1229
      %v1339 = vpop.f32.mrf.mxu0
      %v1340 = vadd.f32 0.0, %v1339
      %v1341 = vpop.f32.mrf.mxu0
      %v1342 = vpop.f32.mrf.mxu0
      %v1343 = vadd.f32 0.0, %v1342
      %v1344 = vpop.f32.mrf.mxu0
      %1345 = vmatprep.mubr.bf16.mxu0 0
      %1346 = vmatmul.mubr.bf16.gmra.mxu0 %v1230
      %v1347 = vpop.f32.mrf.mxu0
      %v1348 = vadd.f32 0.0, %v1347
      %v1349 = vpop.f32.mrf.mxu0
      %v1350 = vpop.f32.mrf.mxu0
      %v1351 = vadd.f32 0.0, %v1350
      %v1352 = vpop.f32.mrf.mxu0
      %1353 = vmatprep.mubr.bf16.mxu0 0
      %1354 = vmatmul.mubr.bf16.gmra.mxu0 %v1231
      %v1355 = vpop.f32.mrf.mxu0
      %v1356 = vadd.f32 0.0, %v1355
      %v1357 = vpop.f32.mrf.mxu0
      %v1358 = vpop.f32.mrf.mxu0
      %v1359 = vadd.f32 0.0, %v1358
      %v1360 = vpop.f32.mrf.mxu0
      %1361 = vdwg.mxu0
      %v1362 = vadd.f32 %v1190, %v1332
      %v1363 = vadd.f32 %v1193, %v1335
      %v1364 = vadd.f32 %v1198, %v1340
      %v1365 = vadd.f32 %v1201, %v1343
      %v1366 = vadd.f32 %v1206, %v1348
      %v1367 = vadd.f32 %v1209, %v1351
      %v1368 = vadd.f32 %v1214, %v1356
      %v1369 = vadd.f32 %v1217, %v1359
      %v1370 = vld [vmem:[%s697] sm:$0xff]
      %v1371 = vld [vmem:[%s697 + $0x20] sm:$0xff]
      %v1372 = vld [vmem:[%s697 + $0x40] sm:$0xff]
      %v1373 = vld [vmem:[%s697 + $0x60] sm:$0xff]
      %v1374 = vld [vmem:[%s697 + $0x80] sm:$0xff]
      %v1375 = vld [vmem:[%s697 + $0xa0] sm:$0xff]
      %v1376 = vld [vmem:[%s697 + $0xc0] sm:$0xff]
      %v1377 = vld [vmem:[%s697 + $0xe0] sm:$0xff]
      %v1378 = vpack.c.bf16 %v1371, %v1370
      %v1379 = vpack.c.bf16 %v1373, %v1372
      %v1380 = vpack.c.bf16 %v1375, %v1374
      %v1381 = vpack.c.bf16 %v1377, %v1376
      %s1382 = scalar_lea.vmem %s3, 192
      %v1383 = vld [vmem:[%s1382] sm:$0xf]
      %v1384 = vld [vmem:[%s1382 + $0x4] sm:$0xf]
      %v1385 = vld [vmem:[%s1382 + $0x8] sm:$0xf]
      %v1386 = vld [vmem:[%s1382 + $0xc] sm:$0xf]
      %v1387 = vld [vmem:[%s1382 + $0x10] sm:$0xf]
      %v1388 = vld [vmem:[%s1382 + $0x14] sm:$0xf]
      %v1389 = vld [vmem:[%s1382 + $0x18] sm:$0xf]
      %v1390 = vld [vmem:[%s1382 + $0x1c] sm:$0xf]
      %v1391 = vld [vmem:[%s1382 + $0x20] sm:$0xf]
      %v1392 = vld [vmem:[%s1382 + $0x24] sm:$0xf]
      %v1393 = vld [vmem:[%s1382 + $0x28] sm:$0xf]
      %v1394 = vld [vmem:[%s1382 + $0x2c] sm:$0xf]
      %v1395 = vld [vmem:[%s1382 + $0x30] sm:$0xf]
      %v1396 = vld [vmem:[%s1382 + $0x34] sm:$0xf]
      %v1397 = vld [vmem:[%s1382 + $0x38] sm:$0xf]
      %v1398 = vld [vmem:[%s1382 + $0x3c] sm:$0xf]
      %v1415 = vunpack.c.l.b16 %v1383
      %v1416 = vunpack.c.l.b16 %v1384
      %v1417 = vunpack.c.l.b16 %v1385
      %v1418 = vunpack.c.l.b16 %v1386
      %v1419 = vunpack.c.l.b16 %v1387
      %v1420 = vunpack.c.l.b16 %v1388
      %v1421 = vunpack.c.l.b16 %v1389
      %v1422 = vunpack.c.l.b16 %v1390
      %v1423 = vunpack.c.l.b16 %v1391
      %v1424 = vunpack.c.l.b16 %v1392
      %v1425 = vunpack.c.l.b16 %v1393
      %v1426 = vunpack.c.l.b16 %v1394
      %v1427 = vunpack.c.l.b16 %v1395
      %v1428 = vunpack.c.l.b16 %v1396
      %v1429 = vunpack.c.l.b16 %v1397
      %v1430 = vunpack.c.l.b16 %v1398
      %v1431 = vpack.c.b16 %v1416, %v1415
      %v1432 = vpack.c.b16 %v1418, %v1417
      %v1433 = vpack.c.b16 %v1420, %v1419
      %v1434 = vpack.c.b16 %v1422, %v1421
      %v1435 = vpack.c.b16 %v1424, %v1423
      %v1436 = vpack.c.b16 %v1426, %v1425
      %v1437 = vpack.c.b16 %v1428, %v1427
      %v1438 = vpack.c.b16 %v1430, %v1429
      %1447 = vmatprep.subr.bf16.mxu0 0
      %1448 = vmatpush1.bf16.msra.mxu0 %v1438
      %1449 = vmatprep.subr.bf16.mxu0 0
      %1450 = vmatpush1.bf16.msra.mxu0 %v1437
      %1451 = vmatprep.subr.bf16.mxu0 0
      %1452 = vmatpush1.bf16.msra.mxu0 %v1436
      %1453 = vmatprep.subr.bf16.mxu0 0
      %1454 = vmatpush1.bf16.msra.mxu0 %v1435
      %1455 = vmatprep.subr.bf16.mxu0 0
      %1456 = vmatpush1.bf16.msra.mxu0 %v1434
      %1457 = vmatprep.subr.bf16.mxu0 0
      %1458 = vmatpush1.bf16.msra.mxu0 %v1433
      %1459 = vmatprep.subr.bf16.mxu0 0
      %1460 = vmatpush1.bf16.msra.mxu0 %v1432
      %1461 = vmatprep.subr.bf16.mxu0 0
      %1462 = vmatpush1.bf16.msra.mxu0 %v1431
      %1463 = vmatprep.subr.bf16.mxu0 0
      %1464 = vmatpush2.bf16.msra.mxu0 0
      %1465 = vmatprep.subr.bf16.mxu0 0
      %1466 = vmatpush2.bf16.msra.mxu0 0
      %1467 = vmatprep.subr.bf16.mxu0 0
      %1468 = vmatpush2.bf16.msra.mxu0 0
      %1469 = vmatprep.subr.bf16.mxu0 0
      %1470 = vmatpush2.bf16.msra.mxu0 0
      %1471 = vmatprep.subr.bf16.mxu0 0
      %1472 = vmatpush2.bf16.msra.mxu0 0
      %1473 = vmatprep.subr.bf16.mxu0 0
      %1474 = vmatpush2.bf16.msra.mxu0 0
      %1475 = vmatprep.subr.bf16.mxu0 0
      %1476 = vmatpush2.bf16.msra.mxu0 0
      %1477 = vmatprep.subr.bf16.mxu0 0
      %1478 = vmatpush2.bf16.msra.mxu0 0
      %1479 = vmatprep.mubr.bf16.mxu0 0
      %1480 = vmatmul.mubr.bf16.gmra.mxu0 %v1378
      %v1481 = vpop.f32.mrf.mxu0
      %v1482 = vadd.f32 0.0, %v1481
      %v1483 = vpop.f32.mrf.mxu0
      %v1484 = vpop.f32.mrf.mxu0
      %v1485 = vadd.f32 0.0, %v1484
      %v1486 = vpop.f32.mrf.mxu0
      %1487 = vmatprep.mubr.bf16.mxu0 0
      %1488 = vmatmul.mubr.bf16.gmra.mxu0 %v1379
      %v1489 = vpop.f32.mrf.mxu0
      %v1490 = vadd.f32 0.0, %v1489
      %v1491 = vpop.f32.mrf.mxu0
      %v1492 = vpop.f32.mrf.mxu0
      %v1493 = vadd.f32 0.0, %v1492
      %v1494 = vpop.f32.mrf.mxu0
      %1495 = vmatprep.mubr.bf16.mxu0 0
      %1496 = vmatmul.mubr.bf16.gmra.mxu0 %v1380
      %v1497 = vpop.f32.mrf.mxu0
      %v1498 = vadd.f32 0.0, %v1497
      %v1499 = vpop.f32.mrf.mxu0
      %v1500 = vpop.f32.mrf.mxu0
      %v1501 = vadd.f32 0.0, %v1500
      %v1502 = vpop.f32.mrf.mxu0
      %1503 = vmatprep.mubr.bf16.mxu0 0
      %1504 = vmatmul.mubr.bf16.gmra.mxu0 %v1381
      %v1505 = vpop.f32.mrf.mxu0
      %v1506 = vadd.f32 0.0, %v1505
      %v1507 = vpop.f32.mrf.mxu0
      %v1508 = vpop.f32.mrf.mxu0
      %v1509 = vadd.f32 0.0, %v1508
      %v1510 = vpop.f32.mrf.mxu0
      %1511 = vdwg.mxu0
      %v1512 = vadd.f32 %v1362, %v1482
      %v1513 = vadd.f32 %v1363, %v1485
      %v1514 = vadd.f32 %v1364, %v1490
      %v1515 = vadd.f32 %v1365, %v1493
      %v1516 = vadd.f32 %v1366, %v1498
      %v1517 = vadd.f32 %v1367, %v1501
      %v1518 = vadd.f32 %v1368, %v1506
      %v1519 = vadd.f32 %v1369, %v1509
      %v1520 = vld [vmem:[%s582] sm:$0xff]
      %v1521 = vld [vmem:[%s582 + $0x20] sm:$0xff]
      %v1522 = vld [vmem:[%s582 + $0x40] sm:$0xff]
      %v1523 = vld [vmem:[%s582 + $0x60] sm:$0xff]
      %v1524 = vld [vmem:[%s582 + $0x80] sm:$0xff]
      %v1525 = vld [vmem:[%s582 + $0xa0] sm:$0xff]
      %v1526 = vld [vmem:[%s582 + $0xc0] sm:$0xff]
      %v1527 = vld [vmem:[%s582 + $0xe0] sm:$0xff]
      %v1528 = vpack.c.bf16 %v1521, %v1520
      %v1529 = vpack.c.bf16 %v1523, %v1522
      %v1530 = vpack.c.bf16 %v1525, %v1524
      %v1531 = vpack.c.bf16 %v1527, %v1526
      %s1532 = scalar_lea.vmem %s3, 256
      %v1533 = vld [vmem:[%s1532] sm:$0xf]
      %v1534 = vld [vmem:[%s1532 + $0x4] sm:$0xf]
      %v1535 = vld [vmem:[%s1532 + $0x8] sm:$0xf]
      %v1536 = vld [vmem:[%s1532 + $0xc] sm:$0xf]
      %v1537 = vld [vmem:[%s1532 + $0x10] sm:$0xf]
      %v1538 = vld [vmem:[%s1532 + $0x14] sm:$0xf]
      %v1539 = vld [vmem:[%s1532 + $0x18] sm:$0xf]
      %v1540 = vld [vmem:[%s1532 + $0x1c] sm:$0xf]
      %v1541 = vld [vmem:[%s1532 + $0x20] sm:$0xf]
      %v1542 = vld [vmem:[%s1532 + $0x24] sm:$0xf]
      %v1543 = vld [vmem:[%s1532 + $0x28] sm:$0xf]
      %v1544 = vld [vmem:[%s1532 + $0x2c] sm:$0xf]
      %v1545 = vld [vmem:[%s1532 + $0x30] sm:$0xf]
      %v1546 = vld [vmem:[%s1532 + $0x34] sm:$0xf]
      %v1547 = vld [vmem:[%s1532 + $0x38] sm:$0xf]
      %v1548 = vld [vmem:[%s1532 + $0x3c] sm:$0xf]
      %v1565 = vunpack.c.l.b16 %v1533
      %v1566 = vunpack.c.l.b16 %v1534
      %v1567 = vunpack.c.l.b16 %v1535
      %v1568 = vunpack.c.l.b16 %v1536
      %v1569 = vunpack.c.l.b16 %v1537
      %v1570 = vunpack.c.l.b16 %v1538
      %v1571 = vunpack.c.l.b16 %v1539
      %v1572 = vunpack.c.l.b16 %v1540
      %v1573 = vunpack.c.l.b16 %v1541
      %v1574 = vunpack.c.l.b16 %v1542
      %v1575 = vunpack.c.l.b16 %v1543
      %v1576 = vunpack.c.l.b16 %v1544
      %v1577 = vunpack.c.l.b16 %v1545
      %v1578 = vunpack.c.l.b16 %v1546
      %v1579 = vunpack.c.l.b16 %v1547
      %v1580 = vunpack.c.l.b16 %v1548
      %v1581 = vpack.c.b16 %v1566, %v1565
      %v1582 = vpack.c.b16 %v1568, %v1567
      %v1583 = vpack.c.b16 %v1570, %v1569
      %v1584 = vpack.c.b16 %v1572, %v1571
      %v1585 = vpack.c.b16 %v1574, %v1573
      %v1586 = vpack.c.b16 %v1576, %v1575
      %v1587 = vpack.c.b16 %v1578, %v1577
      %v1588 = vpack.c.b16 %v1580, %v1579
      %1597 = vmatprep.subr.bf16.mxu0 0
      %1598 = vmatpush1.bf16.msra.mxu0 %v1588
      %1599 = vmatprep.subr.bf16.mxu0 0
      %1600 = vmatpush1.bf16.msra.mxu0 %v1587
      %1601 = vmatprep.subr.bf16.mxu0 0
      %1602 = vmatpush1.bf16.msra.mxu0 %v1586
      %1603 = vmatprep.subr.bf16.mxu0 0
      %1604 = vmatpush1.bf16.msra.mxu0 %v1585
      %1605 = vmatprep.subr.bf16.mxu0 0
      %1606 = vmatpush1.bf16.msra.mxu0 %v1584
      %1607 = vmatprep.subr.bf16.mxu0 0
      %1608 = vmatpush1.bf16.msra.mxu0 %v1583
      %1609 = vmatprep.subr.bf16.mxu0 0
      %1610 = vmatpush1.bf16.msra.mxu0 %v1582
      %1611 = vmatprep.subr.bf16.mxu0 0
      %1612 = vmatpush1.bf16.msra.mxu0 %v1581
      %1613 = vmatprep.subr.bf16.mxu0 0
      %1614 = vmatpush2.bf16.msra.mxu0 0
      %1615 = vmatprep.subr.bf16.mxu0 0
      %1616 = vmatpush2.bf16.msra.mxu0 0
      %1617 = vmatprep.subr.bf16.mxu0 0
      %1618 = vmatpush2.bf16.msra.mxu0 0
      %1619 = vmatprep.subr.bf16.mxu0 0
      %1620 = vmatpush2.bf16.msra.mxu0 0
      %1621 = vmatprep.subr.bf16.mxu0 0
      %1622 = vmatpush2.bf16.msra.mxu0 0
      %1623 = vmatprep.subr.bf16.mxu0 0
      %1624 = vmatpush2.bf16.msra.mxu0 0
      %1625 = vmatprep.subr.bf16.mxu0 0
      %1626 = vmatpush2.bf16.msra.mxu0 0
      %1627 = vmatprep.subr.bf16.mxu0 0
      %1628 = vmatpush2.bf16.msra.mxu0 0
      %1629 = vmatprep.mubr.bf16.mxu0 0
      %1630 = vmatmul.mubr.bf16.gmra.mxu0 %v1528
      %v1631 = vpop.f32.mrf.mxu0
      %v1632 = vadd.f32 0.0, %v1631
      %v1633 = vpop.f32.mrf.mxu0
      %v1634 = vpop.f32.mrf.mxu0
      %v1635 = vadd.f32 0.0, %v1634
      %v1636 = vpop.f32.mrf.mxu0
      %1637 = vmatprep.mubr.bf16.mxu0 0
      %1638 = vmatmul.mubr.bf16.gmra.mxu0 %v1529
      %v1639 = vpop.f32.mrf.mxu0
      %v1640 = vadd.f32 0.0, %v1639
      %v1641 = vpop.f32.mrf.mxu0
      %v1642 = vpop.f32.mrf.mxu0
      %v1643 = vadd.f32 0.0, %v1642
      %v1644 = vpop.f32.mrf.mxu0
      %1645 = vmatprep.mubr.bf16.mxu0 0
      %1646 = vmatmul.mubr.bf16.gmra.mxu0 %v1530
      %v1647 = vpop.f32.mrf.mxu0
      %v1648 = vadd.f32 0.0, %v1647
      %v1649 = vpop.f32.mrf.mxu0
      %v1650 = vpop.f32.mrf.mxu0
      %v1651 = vadd.f32 0.0, %v1650
      %v1652 = vpop.f32.mrf.mxu0
      %1653 = vmatprep.mubr.bf16.mxu0 0
      %1654 = vmatmul.mubr.bf16.gmra.mxu0 %v1531
      %v1655 = vpop.f32.mrf.mxu0
      %v1656 = vadd.f32 0.0, %v1655
      %v1657 = vpop.f32.mrf.mxu0
      %v1658 = vpop.f32.mrf.mxu0
      %v1659 = vadd.f32 0.0, %v1658
      %v1660 = vpop.f32.mrf.mxu0
      %1661 = vdwg.mxu0
      %v1662 = vadd.f32 %v1512, %v1632
      %v1663 = vadd.f32 %v1513, %v1635
      %v1664 = vadd.f32 %v1514, %v1640
      %v1665 = vadd.f32 %v1515, %v1643
      %v1666 = vadd.f32 %v1516, %v1648
      %v1667 = vadd.f32 %v1517, %v1651
      %v1668 = vadd.f32 %v1518, %v1656
      %v1669 = vadd.f32 %v1519, %v1659
      %v1670 = vld [vmem:[%s697 + $0x1] sm:$0xff]
      %v1671 = vld [vmem:[%s697 + $0x21] sm:$0xff]
      %v1672 = vld [vmem:[%s697 + $0x41] sm:$0xff]
      %v1673 = vld [vmem:[%s697 + $0x61] sm:$0xff]
      %v1674 = vld [vmem:[%s697 + $0x81] sm:$0xff]
      %v1675 = vld [vmem:[%s697 + $0xa1] sm:$0xff]
      %v1676 = vld [vmem:[%s697 + $0xc1] sm:$0xff]
      %v1677 = vld [vmem:[%s697 + $0xe1] sm:$0xff]
      %v1678 = vpack.c.bf16 %v1671, %v1670
      %v1679 = vpack.c.bf16 %v1673, %v1672
      %v1680 = vpack.c.bf16 %v1675, %v1674
      %v1681 = vpack.c.bf16 %v1677, %v1676
      %s1682 = scalar_lea.vmem %s3, 320
      %v1683 = vld [vmem:[%s1682] sm:$0xf]
      %v1684 = vld [vmem:[%s1682 + $0x4] sm:$0xf]
      %v1685 = vld [vmem:[%s1682 + $0x8] sm:$0xf]
      %v1686 = vld [vmem:[%s1682 + $0xc] sm:$0xf]
      %v1687 = vld [vmem:[%s1682 + $0x10] sm:$0xf]
      %v1688 = vld [vmem:[%s1682 + $0x14] sm:$0xf]
      %v1689 = vld [vmem:[%s1682 + $0x18] sm:$0xf]
      %v1690 = vld [vmem:[%s1682 + $0x1c] sm:$0xf]
      %v1691 = vld [vmem:[%s1682 + $0x20] sm:$0xf]
      %v1692 = vld [vmem:[%s1682 + $0x24] sm:$0xf]
      %v1693 = vld [vmem:[%s1682 + $0x28] sm:$0xf]
      %v1694 = vld [vmem:[%s1682 + $0x2c] sm:$0xf]
      %v1695 = vld [vmem:[%s1682 + $0x30] sm:$0xf]
      %v1696 = vld [vmem:[%s1682 + $0x34] sm:$0xf]
      %v1697 = vld [vmem:[%s1682 + $0x38] sm:$0xf]
      %v1698 = vld [vmem:[%s1682 + $0x3c] sm:$0xf]
      %v1715 = vunpack.c.l.b16 %v1683
      %v1716 = vunpack.c.l.b16 %v1684
      %v1717 = vunpack.c.l.b16 %v1685
      %v1718 = vunpack.c.l.b16 %v1686
      %v1719 = vunpack.c.l.b16 %v1687
      %v1720 = vunpack.c.l.b16 %v1688
      %v1721 = vunpack.c.l.b16 %v1689
      %v1722 = vunpack.c.l.b16 %v1690
      %v1723 = vunpack.c.l.b16 %v1691
      %v1724 = vunpack.c.l.b16 %v1692
      %v1725 = vunpack.c.l.b16 %v1693
      %v1726 = vunpack.c.l.b16 %v1694
      %v1727 = vunpack.c.l.b16 %v1695
      %v1728 = vunpack.c.l.b16 %v1696
      %v1729 = vunpack.c.l.b16 %v1697
      %v1730 = vunpack.c.l.b16 %v1698
      %v1731 = vpack.c.b16 %v1716, %v1715
      %v1732 = vpack.c.b16 %v1718, %v1717
      %v1733 = vpack.c.b16 %v1720, %v1719
      %v1734 = vpack.c.b16 %v1722, %v1721
      %v1735 = vpack.c.b16 %v1724, %v1723
      %v1736 = vpack.c.b16 %v1726, %v1725
      %v1737 = vpack.c.b16 %v1728, %v1727
      %v1738 = vpack.c.b16 %v1730, %v1729
      %1747 = vmatprep.subr.bf16.mxu0 0
      %1748 = vmatpush1.bf16.msra.mxu0 %v1738
      %1749 = vmatprep.subr.bf16.mxu0 0
      %1750 = vmatpush1.bf16.msra.mxu0 %v1737
      %1751 = vmatprep.subr.bf16.mxu0 0
      %1752 = vmatpush1.bf16.msra.mxu0 %v1736
      %1753 = vmatprep.subr.bf16.mxu0 0
      %1754 = vmatpush1.bf16.msra.mxu0 %v1735
      %1755 = vmatprep.subr.bf16.mxu0 0
      %1756 = vmatpush1.bf16.msra.mxu0 %v1734
      %1757 = vmatprep.subr.bf16.mxu0 0
      %1758 = vmatpush1.bf16.msra.mxu0 %v1733
      %1759 = vmatprep.subr.bf16.mxu0 0
      %1760 = vmatpush1.bf16.msra.mxu0 %v1732
      %1761 = vmatprep.subr.bf16.mxu0 0
      %1762 = vmatpush1.bf16.msra.mxu0 %v1731
      %1763 = vmatprep.subr.bf16.mxu0 0
      %1764 = vmatpush2.bf16.msra.mxu0 0
      %1765 = vmatprep.subr.bf16.mxu0 0
      %1766 = vmatpush2.bf16.msra.mxu0 0
      %1767 = vmatprep.subr.bf16.mxu0 0
      %1768 = vmatpush2.bf16.msra.mxu0 0
      %1769 = vmatprep.subr.bf16.mxu0 0
      %1770 = vmatpush2.bf16.msra.mxu0 0
      %1771 = vmatprep.subr.bf16.mxu0 0
      %1772 = vmatpush2.bf16.msra.mxu0 0
      %1773 = vmatprep.subr.bf16.mxu0 0
      %1774 = vmatpush2.bf16.msra.mxu0 0
      %1775 = vmatprep.subr.bf16.mxu0 0
      %1776 = vmatpush2.bf16.msra.mxu0 0
      %1777 = vmatprep.subr.bf16.mxu0 0
      %1778 = vmatpush2.bf16.msra.mxu0 0
      %1779 = vmatprep.mubr.bf16.mxu0 0
      %1780 = vmatmul.mubr.bf16.gmra.mxu0 %v1678
      %v1781 = vpop.f32.mrf.mxu0
      %v1782 = vadd.f32 0.0, %v1781
      %v1783 = vpop.f32.mrf.mxu0
      %v1784 = vpop.f32.mrf.mxu0
      %v1785 = vadd.f32 0.0, %v1784
      %v1786 = vpop.f32.mrf.mxu0
      %1787 = vmatprep.mubr.bf16.mxu0 0
      %1788 = vmatmul.mubr.bf16.gmra.mxu0 %v1679
      %v1789 = vpop.f32.mrf.mxu0
      %v1790 = vadd.f32 0.0, %v1789
      %v1791 = vpop.f32.mrf.mxu0
      %v1792 = vpop.f32.mrf.mxu0
      %v1793 = vadd.f32 0.0, %v1792
      %v1794 = vpop.f32.mrf.mxu0
      %1795 = vmatprep.mubr.bf16.mxu0 0
      %1796 = vmatmul.mubr.bf16.gmra.mxu0 %v1680
      %v1797 = vpop.f32.mrf.mxu0
      %v1798 = vadd.f32 0.0, %v1797
      %v1799 = vpop.f32.mrf.mxu0
      %v1800 = vpop.f32.mrf.mxu0
      %v1801 = vadd.f32 0.0, %v1800
      %v1802 = vpop.f32.mrf.mxu0
      %1803 = vmatprep.mubr.bf16.mxu0 0
      %1804 = vmatmul.mubr.bf16.gmra.mxu0 %v1681
      %v1805 = vpop.f32.mrf.mxu0
      %v1806 = vadd.f32 0.0, %v1805
      %v1807 = vpop.f32.mrf.mxu0
      %v1808 = vpop.f32.mrf.mxu0
      %v1809 = vadd.f32 0.0, %v1808
      %v1810 = vpop.f32.mrf.mxu0
      %1811 = vdwg.mxu0
      %v1812 = vadd.f32 %v1662, %v1782
      %v1813 = vadd.f32 %v1663, %v1785
      %v1814 = vadd.f32 %v1664, %v1790
      %v1815 = vadd.f32 %v1665, %v1793
      %v1816 = vadd.f32 %v1666, %v1798
      %v1817 = vadd.f32 %v1667, %v1801
      %v1818 = vadd.f32 %v1668, %v1806
      %v1819 = vadd.f32 %v1669, %v1809
      %v1820 = vld [vmem:[%s927] sm:$0xff]
      %v1821 = vld [vmem:[%s927 + $0x20] sm:$0xff]
      %v1822 = vld [vmem:[%s927 + $0x40] sm:$0xff]
      %v1823 = vld [vmem:[%s927 + $0x60] sm:$0xff]
      %v1824 = vld [vmem:[%s927 + $0x80] sm:$0xff]
      %v1825 = vld [vmem:[%s927 + $0xa0] sm:$0xff]
      %v1826 = vld [vmem:[%s927 + $0xc0] sm:$0xff]
      %v1827 = vld [vmem:[%s927 + $0xe0] sm:$0xff]
      %v1828 = vpack.c.bf16 %v1821, %v1820
      %v1829 = vpack.c.bf16 %v1823, %v1822
      %v1830 = vpack.c.bf16 %v1825, %v1824
      %v1831 = vpack.c.bf16 %v1827, %v1826
      %s1832 = scalar_lea.vmem %s3, 384
      %v1833 = vld [vmem:[%s1832] sm:$0xf]
      %v1834 = vld [vmem:[%s1832 + $0x4] sm:$0xf]
      %v1835 = vld [vmem:[%s1832 + $0x8] sm:$0xf]
      %v1836 = vld [vmem:[%s1832 + $0xc] sm:$0xf]
      %v1837 = vld [vmem:[%s1832 + $0x10] sm:$0xf]
      %v1838 = vld [vmem:[%s1832 + $0x14] sm:$0xf]
      %v1839 = vld [vmem:[%s1832 + $0x18] sm:$0xf]
      %v1840 = vld [vmem:[%s1832 + $0x1c] sm:$0xf]
      %v1841 = vld [vmem:[%s1832 + $0x20] sm:$0xf]
      %v1842 = vld [vmem:[%s1832 + $0x24] sm:$0xf]
      %v1843 = vld [vmem:[%s1832 + $0x28] sm:$0xf]
      %v1844 = vld [vmem:[%s1832 + $0x2c] sm:$0xf]
      %v1845 = vld [vmem:[%s1832 + $0x30] sm:$0xf]
      %v1846 = vld [vmem:[%s1832 + $0x34] sm:$0xf]
      %v1847 = vld [vmem:[%s1832 + $0x38] sm:$0xf]
      %v1848 = vld [vmem:[%s1832 + $0x3c] sm:$0xf]
      %v1865 = vunpack.c.l.b16 %v1833
      %v1866 = vunpack.c.l.b16 %v1834
      %v1867 = vunpack.c.l.b16 %v1835
      %v1868 = vunpack.c.l.b16 %v1836
      %v1869 = vunpack.c.l.b16 %v1837
      %v1870 = vunpack.c.l.b16 %v1838
      %v1871 = vunpack.c.l.b16 %v1839
      %v1872 = vunpack.c.l.b16 %v1840
      %v1873 = vunpack.c.l.b16 %v1841
      %v1874 = vunpack.c.l.b16 %v1842
      %v1875 = vunpack.c.l.b16 %v1843
      %v1876 = vunpack.c.l.b16 %v1844
      %v1877 = vunpack.c.l.b16 %v1845
      %v1878 = vunpack.c.l.b16 %v1846
      %v1879 = vunpack.c.l.b16 %v1847
      %v1880 = vunpack.c.l.b16 %v1848
      %v1881 = vpack.c.b16 %v1866, %v1865
      %v1882 = vpack.c.b16 %v1868, %v1867
      %v1883 = vpack.c.b16 %v1870, %v1869
      %v1884 = vpack.c.b16 %v1872, %v1871
      %v1885 = vpack.c.b16 %v1874, %v1873
      %v1886 = vpack.c.b16 %v1876, %v1875
      %v1887 = vpack.c.b16 %v1878, %v1877
      %v1888 = vpack.c.b16 %v1880, %v1879
      %1897 = vmatprep.subr.bf16.mxu0 0
      %1898 = vmatpush1.bf16.msra.mxu0 %v1888
      %1899 = vmatprep.subr.bf16.mxu0 0
      %1900 = vmatpush1.bf16.msra.mxu0 %v1887
      %1901 = vmatprep.subr.bf16.mxu0 0
      %1902 = vmatpush1.bf16.msra.mxu0 %v1886
      %1903 = vmatprep.subr.bf16.mxu0 0
      %1904 = vmatpush1.bf16.msra.mxu0 %v1885
      %1905 = vmatprep.subr.bf16.mxu0 0
      %1906 = vmatpush1.bf16.msra.mxu0 %v1884
      %1907 = vmatprep.subr.bf16.mxu0 0
      %1908 = vmatpush1.bf16.msra.mxu0 %v1883
      %1909 = vmatprep.subr.bf16.mxu0 0
      %1910 = vmatpush1.bf16.msra.mxu0 %v1882
      %1911 = vmatprep.subr.bf16.mxu0 0
      %1912 = vmatpush1.bf16.msra.mxu0 %v1881
      %1913 = vmatprep.subr.bf16.mxu0 0
      %1914 = vmatpush2.bf16.msra.mxu0 0
      %1915 = vmatprep.subr.bf16.mxu0 0
      %1916 = vmatpush2.bf16.msra.mxu0 0
      %1917 = vmatprep.subr.bf16.mxu0 0
      %1918 = vmatpush2.bf16.msra.mxu0 0
      %1919 = vmatprep.subr.bf16.mxu0 0
      %1920 = vmatpush2.bf16.msra.mxu0 0
      %1921 = vmatprep.subr.bf16.mxu0 0
      %1922 = vmatpush2.bf16.msra.mxu0 0
      %1923 = vmatprep.subr.bf16.mxu0 0
      %1924 = vmatpush2.bf16.msra.mxu0 0
      %1925 = vmatprep.subr.bf16.mxu0 0
      %1926 = vmatpush2.bf16.msra.mxu0 0
      %1927 = vmatprep.subr.bf16.mxu0 0
      %1928 = vmatpush2.bf16.msra.mxu0 0
      %1929 = vmatprep.mubr.bf16.mxu0 0
      %1930 = vmatmul.mubr.bf16.gmra.mxu0 %v1828
      %v1931 = vpop.f32.mrf.mxu0
      %v1932 = vadd.f32 0.0, %v1931
      %v1933 = vpop.f32.mrf.mxu0
      %v1934 = vpop.f32.mrf.mxu0
      %v1935 = vadd.f32 0.0, %v1934
      %v1936 = vpop.f32.mrf.mxu0
      %1937 = vmatprep.mubr.bf16.mxu0 0
      %1938 = vmatmul.mubr.bf16.gmra.mxu0 %v1829
      %v1939 = vpop.f32.mrf.mxu0
      %v1940 = vadd.f32 0.0, %v1939
      %v1941 = vpop.f32.mrf.mxu0
      %v1942 = vpop.f32.mrf.mxu0
      %v1943 = vadd.f32 0.0, %v1942
      %v1944 = vpop.f32.mrf.mxu0
      %1945 = vmatprep.mubr.bf16.mxu0 0
      %1946 = vmatmul.mubr.bf16.gmra.mxu0 %v1830
      %v1947 = vpop.f32.mrf.mxu0
      %v1948 = vadd.f32 0.0, %v1947
      %v1949 = vpop.f32.mrf.mxu0
      %v1950 = vpop.f32.mrf.mxu0
      %v1951 = vadd.f32 0.0, %v1950
      %v1952 = vpop.f32.mrf.mxu0
      %1953 = vmatprep.mubr.bf16.mxu0 0
      %1954 = vmatmul.mubr.bf16.gmra.mxu0 %v1831
      %v1955 = vpop.f32.mrf.mxu0
      %v1956 = vadd.f32 0.0, %v1955
      %v1957 = vpop.f32.mrf.mxu0
      %v1958 = vpop.f32.mrf.mxu0
      %v1959 = vadd.f32 0.0, %v1958
      %v1960 = vpop.f32.mrf.mxu0
      %1961 = vdwg.mxu0
      %v1962 = vadd.f32 %v1812, %v1932
      %v1963 = vadd.f32 %v1813, %v1935
      %v1964 = vadd.f32 %v1814, %v1940
      %v1965 = vadd.f32 %v1815, %v1943
      %v1966 = vadd.f32 %v1816, %v1948
      %v1967 = vadd.f32 %v1817, %v1951
      %v1968 = vadd.f32 %v1818, %v1956
      %v1969 = vadd.f32 %v1819, %v1959
      %v1970 = vld [vmem:[%s812] sm:$0xff]
      %v1971 = vld [vmem:[%s812 + $0x20] sm:$0xff]
      %v1972 = vld [vmem:[%s812 + $0x40] sm:$0xff]
      %v1973 = vld [vmem:[%s812 + $0x60] sm:$0xff]
      %v1974 = vld [vmem:[%s812 + $0x80] sm:$0xff]
      %v1975 = vld [vmem:[%s812 + $0xa0] sm:$0xff]
      %v1976 = vld [vmem:[%s812 + $0xc0] sm:$0xff]
      %v1977 = vld [vmem:[%s812 + $0xe0] sm:$0xff]
      %v1978 = vpack.c.bf16 %v1971, %v1970
      %v1979 = vpack.c.bf16 %v1973, %v1972
      %v1980 = vpack.c.bf16 %v1975, %v1974
      %v1981 = vpack.c.bf16 %v1977, %v1976
      %s1982 = scalar_lea.vmem %s3, 448
      %v1983 = vld [vmem:[%s1982] sm:$0xf]
      %v1984 = vld [vmem:[%s1982 + $0x4] sm:$0xf]
      %v1985 = vld [vmem:[%s1982 + $0x8] sm:$0xf]
      %v1986 = vld [vmem:[%s1982 + $0xc] sm:$0xf]
      %v1987 = vld [vmem:[%s1982 + $0x10] sm:$0xf]
      %v1988 = vld [vmem:[%s1982 + $0x14] sm:$0xf]
      %v1989 = vld [vmem:[%s1982 + $0x18] sm:$0xf]
      %v1990 = vld [vmem:[%s1982 + $0x1c] sm:$0xf]
      %v1991 = vld [vmem:[%s1982 + $0x20] sm:$0xf]
      %v1992 = vld [vmem:[%s1982 + $0x24] sm:$0xf]
      %v1993 = vld [vmem:[%s1982 + $0x28] sm:$0xf]
      %v1994 = vld [vmem:[%s1982 + $0x2c] sm:$0xf]
      %v1995 = vld [vmem:[%s1982 + $0x30] sm:$0xf]
      %v1996 = vld [vmem:[%s1982 + $0x34] sm:$0xf]
      %v1997 = vld [vmem:[%s1982 + $0x38] sm:$0xf]
      %v1998 = vld [vmem:[%s1982 + $0x3c] sm:$0xf]
      %v2015 = vunpack.c.l.b16 %v1983
      %v2016 = vunpack.c.l.b16 %v1984
      %v2017 = vunpack.c.l.b16 %v1985
      %v2018 = vunpack.c.l.b16 %v1986
      %v2019 = vunpack.c.l.b16 %v1987
      %v2020 = vunpack.c.l.b16 %v1988
      %v2021 = vunpack.c.l.b16 %v1989
      %v2022 = vunpack.c.l.b16 %v1990
      %v2023 = vunpack.c.l.b16 %v1991
      %v2024 = vunpack.c.l.b16 %v1992
      %v2025 = vunpack.c.l.b16 %v1993
      %v2026 = vunpack.c.l.b16 %v1994
      %v2027 = vunpack.c.l.b16 %v1995
      %v2028 = vunpack.c.l.b16 %v1996
      %v2029 = vunpack.c.l.b16 %v1997
      %v2030 = vunpack.c.l.b16 %v1998
      %v2031 = vpack.c.b16 %v2016, %v2015
      %v2032 = vpack.c.b16 %v2018, %v2017
      %v2033 = vpack.c.b16 %v2020, %v2019
      %v2034 = vpack.c.b16 %v2022, %v2021
      %v2035 = vpack.c.b16 %v2024, %v2023
      %v2036 = vpack.c.b16 %v2026, %v2025
      %v2037 = vpack.c.b16 %v2028, %v2027
      %v2038 = vpack.c.b16 %v2030, %v2029
      %2047 = vmatprep.subr.bf16.mxu0 0
      %2048 = vmatpush1.bf16.msra.mxu0 %v2038
      %2049 = vmatprep.subr.bf16.mxu0 0
      %2050 = vmatpush1.bf16.msra.mxu0 %v2037
      %2051 = vmatprep.subr.bf16.mxu0 0
      %2052 = vmatpush1.bf16.msra.mxu0 %v2036
      %2053 = vmatprep.subr.bf16.mxu0 0
      %2054 = vmatpush1.bf16.msra.mxu0 %v2035
      %2055 = vmatprep.subr.bf16.mxu0 0
      %2056 = vmatpush1.bf16.msra.mxu0 %v2034
      %2057 = vmatprep.subr.bf16.mxu0 0
      %2058 = vmatpush1.bf16.msra.mxu0 %v2033
      %2059 = vmatprep.subr.bf16.mxu0 0
      %2060 = vmatpush1.bf16.msra.mxu0 %v2032
      %2061 = vmatprep.subr.bf16.mxu0 0
      %2062 = vmatpush1.bf16.msra.mxu0 %v2031
      %2063 = vmatprep.subr.bf16.mxu0 0
      %2064 = vmatpush2.bf16.msra.mxu0 0
      %2065 = vmatprep.subr.bf16.mxu0 0
      %2066 = vmatpush2.bf16.msra.mxu0 0
      %2067 = vmatprep.subr.bf16.mxu0 0
      %2068 = vmatpush2.bf16.msra.mxu0 0
      %2069 = vmatprep.subr.bf16.mxu0 0
      %2070 = vmatpush2.bf16.msra.mxu0 0
      %2071 = vmatprep.subr.bf16.mxu0 0
      %2072 = vmatpush2.bf16.msra.mxu0 0
      %2073 = vmatprep.subr.bf16.mxu0 0
      %2074 = vmatpush2.bf16.msra.mxu0 0
      %2075 = vmatprep.subr.bf16.mxu0 0
      %2076 = vmatpush2.bf16.msra.mxu0 0
      %2077 = vmatprep.subr.bf16.mxu0 0
      %2078 = vmatpush2.bf16.msra.mxu0 0
      %2079 = vmatprep.mubr.bf16.mxu0 0
      %2080 = vmatmul.mubr.bf16.gmra.mxu0 %v1978
      %v2081 = vpop.f32.mrf.mxu0
      %v2082 = vadd.f32 0.0, %v2081
      %v2083 = vpop.f32.mrf.mxu0
      %v2084 = vpop.f32.mrf.mxu0
      %v2085 = vadd.f32 0.0, %v2084
      %v2086 = vpop.f32.mrf.mxu0
      %2087 = vmatprep.mubr.bf16.mxu0 0
      %2088 = vmatmul.mubr.bf16.gmra.mxu0 %v1979
      %v2089 = vpop.f32.mrf.mxu0
      %v2090 = vadd.f32 0.0, %v2089
      %v2091 = vpop.f32.mrf.mxu0
      %v2092 = vpop.f32.mrf.mxu0
      %v2093 = vadd.f32 0.0, %v2092
      %v2094 = vpop.f32.mrf.mxu0
      %2095 = vmatprep.mubr.bf16.mxu0 0
      %2096 = vmatmul.mubr.bf16.gmra.mxu0 %v1980
      %v2097 = vpop.f32.mrf.mxu0
      %v2098 = vadd.f32 0.0, %v2097
      %v2099 = vpop.f32.mrf.mxu0
      %v2100 = vpop.f32.mrf.mxu0
      %v2101 = vadd.f32 0.0, %v2100
      %v2102 = vpop.f32.mrf.mxu0
      %2103 = vmatprep.mubr.bf16.mxu0 0
      %2104 = vmatmul.mubr.bf16.gmra.mxu0 %v1981
      %v2105 = vpop.f32.mrf.mxu0
      %v2106 = vadd.f32 0.0, %v2105
      %v2107 = vpop.f32.mrf.mxu0
      %v2108 = vpop.f32.mrf.mxu0
      %v2109 = vadd.f32 0.0, %v2108
      %v2110 = vpop.f32.mrf.mxu0
      %2111 = vdwg.mxu0
      %v2112 = vadd.f32 %v1962, %v2082
      %v2113 = vadd.f32 %v1963, %v2085
      %v2114 = vadd.f32 %v1964, %v2090
      %v2115 = vadd.f32 %v1965, %v2093
      %v2116 = vadd.f32 %v1966, %v2098
      %v2117 = vadd.f32 %v1967, %v2101
      %v2118 = vadd.f32 %v1968, %v2106
      %v2119 = vadd.f32 %v1969, %v2109
      %v2120 = vld [vmem:[%s927 + $0x1] sm:$0xff]
      %v2121 = vld [vmem:[%s927 + $0x21] sm:$0xff]
      %v2122 = vld [vmem:[%s927 + $0x41] sm:$0xff]
      %v2123 = vld [vmem:[%s927 + $0x61] sm:$0xff]
      %v2124 = vld [vmem:[%s927 + $0x81] sm:$0xff]
      %v2125 = vld [vmem:[%s927 + $0xa1] sm:$0xff]
      %v2126 = vld [vmem:[%s927 + $0xc1] sm:$0xff]
      %v2127 = vld [vmem:[%s927 + $0xe1] sm:$0xff]
      %v2128 = vpack.c.bf16 %v2121, %v2120
      %v2129 = vpack.c.bf16 %v2123, %v2122
      %v2130 = vpack.c.bf16 %v2125, %v2124
      %v2131 = vpack.c.bf16 %v2127, %v2126
      %s2132 = scalar_lea.vmem %s3, 512
      %v2133 = vld [vmem:[%s2132] sm:$0xf]
      %v2134 = vld [vmem:[%s2132 + $0x4] sm:$0xf]
      %v2135 = vld [vmem:[%s2132 + $0x8] sm:$0xf]
      %v2136 = vld [vmem:[%s2132 + $0xc] sm:$0xf]
      %v2137 = vld [vmem:[%s2132 + $0x10] sm:$0xf]
      %v2138 = vld [vmem:[%s2132 + $0x14] sm:$0xf]
      %v2139 = vld [vmem:[%s2132 + $0x18] sm:$0xf]
      %v2140 = vld [vmem:[%s2132 + $0x1c] sm:$0xf]
      %v2141 = vld [vmem:[%s2132 + $0x20] sm:$0xf]
      %v2142 = vld [vmem:[%s2132 + $0x24] sm:$0xf]
      %v2143 = vld [vmem:[%s2132 + $0x28] sm:$0xf]
      %v2144 = vld [vmem:[%s2132 + $0x2c] sm:$0xf]
      %v2145 = vld [vmem:[%s2132 + $0x30] sm:$0xf]
      %v2146 = vld [vmem:[%s2132 + $0x34] sm:$0xf]
      %v2147 = vld [vmem:[%s2132 + $0x38] sm:$0xf]
      %v2148 = vld [vmem:[%s2132 + $0x3c] sm:$0xf]
      %v2165 = vunpack.c.l.b16 %v2133
      %v2166 = vunpack.c.l.b16 %v2134
      %v2167 = vunpack.c.l.b16 %v2135
      %v2168 = vunpack.c.l.b16 %v2136
      %v2169 = vunpack.c.l.b16 %v2137
      %v2170 = vunpack.c.l.b16 %v2138
      %v2171 = vunpack.c.l.b16 %v2139
      %v2172 = vunpack.c.l.b16 %v2140
      %v2173 = vunpack.c.l.b16 %v2141
      %v2174 = vunpack.c.l.b16 %v2142
      %v2175 = vunpack.c.l.b16 %v2143
      %v2176 = vunpack.c.l.b16 %v2144
      %v2177 = vunpack.c.l.b16 %v2145
      %v2178 = vunpack.c.l.b16 %v2146
      %v2179 = vunpack.c.l.b16 %v2147
      %v2180 = vunpack.c.l.b16 %v2148
      %v2181 = vpack.c.b16 %v2166, %v2165
      %v2182 = vpack.c.b16 %v2168, %v2167
      %v2183 = vpack.c.b16 %v2170, %v2169
      %v2184 = vpack.c.b16 %v2172, %v2171
      %v2185 = vpack.c.b16 %v2174, %v2173
      %v2186 = vpack.c.b16 %v2176, %v2175
      %v2187 = vpack.c.b16 %v2178, %v2177
      %v2188 = vpack.c.b16 %v2180, %v2179
      %2197 = vmatprep.subr.bf16.mxu0 0
      %2198 = vmatpush1.bf16.msra.mxu0 %v2188
      %2199 = vmatprep.subr.bf16.mxu0 0
      %2200 = vmatpush1.bf16.msra.mxu0 %v2187
      %2201 = vmatprep.subr.bf16.mxu0 0
      %2202 = vmatpush1.bf16.msra.mxu0 %v2186
      %2203 = vmatprep.subr.bf16.mxu0 0
      %2204 = vmatpush1.bf16.msra.mxu0 %v2185
      %2205 = vmatprep.subr.bf16.mxu0 0
      %2206 = vmatpush1.bf16.msra.mxu0 %v2184
      %2207 = vmatprep.subr.bf16.mxu0 0
      %2208 = vmatpush1.bf16.msra.mxu0 %v2183
      %2209 = vmatprep.subr.bf16.mxu0 0
      %2210 = vmatpush1.bf16.msra.mxu0 %v2182
      %2211 = vmatprep.subr.bf16.mxu0 0
      %2212 = vmatpush1.bf16.msra.mxu0 %v2181
      %2213 = vmatprep.subr.bf16.mxu0 0
      %2214 = vmatpush2.bf16.msra.mxu0 0
      %2215 = vmatprep.subr.bf16.mxu0 0
      %2216 = vmatpush2.bf16.msra.mxu0 0
      %2217 = vmatprep.subr.bf16.mxu0 0
      %2218 = vmatpush2.bf16.msra.mxu0 0
      %2219 = vmatprep.subr.bf16.mxu0 0
      %2220 = vmatpush2.bf16.msra.mxu0 0
      %2221 = vmatprep.subr.bf16.mxu0 0
      %2222 = vmatpush2.bf16.msra.mxu0 0
      %2223 = vmatprep.subr.bf16.mxu0 0
      %2224 = vmatpush2.bf16.msra.mxu0 0
      %2225 = vmatprep.subr.bf16.mxu0 0
      %2226 = vmatpush2.bf16.msra.mxu0 0
      %2227 = vmatprep.subr.bf16.mxu0 0
      %2228 = vmatpush2.bf16.msra.mxu0 0
      %2229 = vmatprep.mubr.bf16.mxu0 0
      %2230 = vmatmul.mubr.bf16.gmra.mxu0 %v2128
      %v2231 = vpop.f32.mrf.mxu0
      %v2232 = vadd.f32 0.0, %v2231
      %v2233 = vpop.f32.mrf.mxu0
      %v2234 = vpop.f32.mrf.mxu0
      %v2235 = vadd.f32 0.0, %v2234
      %v2236 = vpop.f32.mrf.mxu0
      %2237 = vmatprep.mubr.bf16.mxu0 0
      %2238 = vmatmul.mubr.bf16.gmra.mxu0 %v2129
      %v2239 = vpop.f32.mrf.mxu0
      %v2240 = vadd.f32 0.0, %v2239
      %v2241 = vpop.f32.mrf.mxu0
      %v2242 = vpop.f32.mrf.mxu0
      %v2243 = vadd.f32 0.0, %v2242
      %v2244 = vpop.f32.mrf.mxu0
      %2245 = vmatprep.mubr.bf16.mxu0 0
      %2246 = vmatmul.mubr.bf16.gmra.mxu0 %v2130
      %v2247 = vpop.f32.mrf.mxu0
      %v2248 = vadd.f32 0.0, %v2247
      %v2249 = vpop.f32.mrf.mxu0
      %v2250 = vpop.f32.mrf.mxu0
      %v2251 = vadd.f32 0.0, %v2250
      %v2252 = vpop.f32.mrf.mxu0
      %2253 = vmatprep.mubr.bf16.mxu0 0
      %2254 = vmatmul.mubr.bf16.gmra.mxu0 %v2131
      %v2255 = vpop.f32.mrf.mxu0
      %v2256 = vadd.f32 0.0, %v2255
      %v2257 = vpop.f32.mrf.mxu0
      %v2258 = vpop.f32.mrf.mxu0
      %v2259 = vadd.f32 0.0, %v2258
      %v2260 = vpop.f32.mrf.mxu0
      %2261 = vdwg.mxu0
      %v2262 = vadd.f32 %v2112, %v2232
      %v2263 = vadd.f32 %v2113, %v2235
      %v2264 = vadd.f32 %v2114, %v2240
      %v2265 = vadd.f32 %v2115, %v2243
      %v2266 = vadd.f32 %v2116, %v2248
      %v2267 = vadd.f32 %v2117, %v2251
      %v2268 = vadd.f32 %v2118, %v2256
      %v2269 = vadd.f32 %v2119, %v2259
      %v2270 = vld [vmem:[%s4] sm:$0x1]
      %v2272 = vlaneseq
      %v2273 = vshrl.u32 %v2272, 7
      %v2274 = vsub.s32 0, %v2273
      %v2275 = vrot.slane %v2270, %v2274
      %v2277 = vadd.f32 %v2262, %v2275
      %v2278 = vadd.f32 %v2263, %v2275
      %v2279 = vadd.f32 %v2264, %v2275
      %v2280 = vadd.f32 %v2265, %v2275
      %v2281 = vadd.f32 %v2266, %v2275
      %v2282 = vadd.f32 %v2267, %v2275
      %v2283 = vadd.f32 %v2268, %v2275
      %v2284 = vadd.f32 %v2269, %v2275
      %v2285 = vmax.f32 %v2277, 0.0
      %v2286 = vmax.f32 %v2278, 0.0
      %v2287 = vmax.f32 %v2279, 0.0
      %v2288 = vmax.f32 %v2280, 0.0
      %v2289 = vmax.f32 %v2281, 0.0
      %v2290 = vmax.f32 %v2282, 0.0
      %v2291 = vmax.f32 %v2283, 0.0
      %v2292 = vmax.f32 %v2284, 0.0
      %v2293 = vpack.c.bf16 %v2286, %v2285
      %v2294 = vpack.c.bf16 %v2288, %v2287
      %v2295 = vpack.c.bf16 %v2290, %v2289
      %v2296 = vpack.c.bf16 %v2292, %v2291
      %v2297 = vld [vmem:[%s5] sm:$0xf]
      %v2298 = vld [vmem:[%s5 + $0x4] sm:$0xf]
      %v2299 = vld [vmem:[%s5 + $0x8] sm:$0xf]
      %v2300 = vld [vmem:[%s5 + $0xc] sm:$0xf]
      %v2301 = vld [vmem:[%s5 + $0x10] sm:$0xf]
      %v2302 = vld [vmem:[%s5 + $0x14] sm:$0xf]
      %v2303 = vld [vmem:[%s5 + $0x18] sm:$0xf]
      %v2304 = vld [vmem:[%s5 + $0x1c] sm:$0xf]
      %v2305 = vld [vmem:[%s5 + $0x20] sm:$0xf]
      %v2306 = vld [vmem:[%s5 + $0x24] sm:$0xf]
      %v2307 = vld [vmem:[%s5 + $0x28] sm:$0xf]
      %v2308 = vld [vmem:[%s5 + $0x2c] sm:$0xf]
      %v2309 = vld [vmem:[%s5 + $0x30] sm:$0xf]
      %v2310 = vld [vmem:[%s5 + $0x34] sm:$0xf]
      %v2311 = vld [vmem:[%s5 + $0x38] sm:$0xf]
      %v2312 = vld [vmem:[%s5 + $0x3c] sm:$0xf]
      %v2313 = vld [vmem:[%s6] sm:$0x1]
      %v2315 = vlaneseq
      %v2316 = vshrl.u32 %v2315, 7
      %v2317 = vsub.s32 0, %v2316
      %v2318 = vrot.slane %v2313, %v2317
      %v2336 = vunpack.c.l.b16 %v2297
      %v2337 = vunpack.c.l.b16 %v2298
      %v2338 = vunpack.c.l.b16 %v2299
      %v2339 = vunpack.c.l.b16 %v2300
      %v2340 = vunpack.c.l.b16 %v2301
      %v2341 = vunpack.c.l.b16 %v2302
      %v2342 = vunpack.c.l.b16 %v2303
      %v2343 = vunpack.c.l.b16 %v2304
      %v2344 = vunpack.c.l.b16 %v2305
      %v2345 = vunpack.c.l.b16 %v2306
      %v2346 = vunpack.c.l.b16 %v2307
      %v2347 = vunpack.c.l.b16 %v2308
      %v2348 = vunpack.c.l.b16 %v2309
      %v2349 = vunpack.c.l.b16 %v2310
      %v2350 = vunpack.c.l.b16 %v2311
      %v2351 = vunpack.c.l.b16 %v2312
      %v2352 = vpack.c.b16 %v2337, %v2336
      %v2353 = vpack.c.b16 %v2339, %v2338
      %v2354 = vpack.c.b16 %v2341, %v2340
      %v2355 = vpack.c.b16 %v2343, %v2342
      %v2356 = vpack.c.b16 %v2345, %v2344
      %v2357 = vpack.c.b16 %v2347, %v2346
      %v2358 = vpack.c.b16 %v2349, %v2348
      %v2359 = vpack.c.b16 %v2351, %v2350
      %2368 = vmatprep.subr.bf16.mxu0 0
      %2369 = vmatpush1.bf16.msra.mxu0 %v2359
      %2370 = vmatprep.subr.bf16.mxu0 0
      %2371 = vmatpush1.bf16.msra.mxu0 %v2358
      %2372 = vmatprep.subr.bf16.mxu0 0
      %2373 = vmatpush1.bf16.msra.mxu0 %v2357
      %2374 = vmatprep.subr.bf16.mxu0 0
      %2375 = vmatpush1.bf16.msra.mxu0 %v2356
      %2376 = vmatprep.subr.bf16.mxu0 0
      %2377 = vmatpush1.bf16.msra.mxu0 %v2355
      %2378 = vmatprep.subr.bf16.mxu0 0
      %2379 = vmatpush1.bf16.msra.mxu0 %v2354
      %2380 = vmatprep.subr.bf16.mxu0 0
      %2381 = vmatpush1.bf16.msra.mxu0 %v2353
      %2382 = vmatprep.subr.bf16.mxu0 0
      %2383 = vmatpush1.bf16.msra.mxu0 %v2352
      %2384 = vmatprep.subr.bf16.mxu0 0
      %2385 = vmatpush2.bf16.msra.mxu0 0
      %2386 = vmatprep.subr.bf16.mxu0 0
      %2387 = vmatpush2.bf16.msra.mxu0 0
      %2388 = vmatprep.subr.bf16.mxu0 0
      %2389 = vmatpush2.bf16.msra.mxu0 0
      %2390 = vmatprep.subr.bf16.mxu0 0
      %2391 = vmatpush2.bf16.msra.mxu0 0
      %2392 = vmatprep.subr.bf16.mxu0 0
      %2393 = vmatpush2.bf16.msra.mxu0 0
      %2394 = vmatprep.subr.bf16.mxu0 0
      %2395 = vmatpush2.bf16.msra.mxu0 0
      %2396 = vmatprep.subr.bf16.mxu0 0
      %2397 = vmatpush2.bf16.msra.mxu0 0
      %2398 = vmatprep.subr.bf16.mxu0 0
      %2399 = vmatpush2.bf16.msra.mxu0 0
      %2400 = vmatprep.mubr.bf16.mxu0 0
      %2401 = vmatmul.mubr.bf16.gmra.mxu0 %v2293
      %v2402 = vpop.f32.mrf.mxu0
      %v2403 = vadd.f32 %v2318, %v2402
      %v2404 = vpop.f32.mrf.mxu0
      %v2405 = vpop.f32.mrf.mxu0
      %v2406 = vadd.f32 %v2318, %v2405
      %v2407 = vpop.f32.mrf.mxu0
      %2408 = vmatprep.mubr.bf16.mxu0 0
      %2409 = vmatmul.mubr.bf16.gmra.mxu0 %v2294
      %v2410 = vpop.f32.mrf.mxu0
      %v2411 = vadd.f32 %v2318, %v2410
      %v2412 = vpop.f32.mrf.mxu0
      %v2413 = vpop.f32.mrf.mxu0
      %v2414 = vadd.f32 %v2318, %v2413
      %v2415 = vpop.f32.mrf.mxu0
      %2416 = vmatprep.mubr.bf16.mxu0 0
      %2417 = vmatmul.mubr.bf16.gmra.mxu0 %v2295
      %v2418 = vpop.f32.mrf.mxu0
      %v2419 = vadd.f32 %v2318, %v2418
      %v2420 = vpop.f32.mrf.mxu0
      %v2421 = vpop.f32.mrf.mxu0
      %v2422 = vadd.f32 %v2318, %v2421
      %v2423 = vpop.f32.mrf.mxu0
      %2424 = vmatprep.mubr.bf16.mxu0 0
      %2425 = vmatmul.mubr.bf16.gmra.mxu0 %v2296
      %v2426 = vpop.f32.mrf.mxu0
      %v2427 = vadd.f32 %v2318, %v2426
      %v2428 = vpop.f32.mrf.mxu0
      %v2429 = vpop.f32.mrf.mxu0
      %v2430 = vadd.f32 %v2318, %v2429
      %v2431 = vpop.f32.mrf.mxu0
      %2432 = vdwg.mxu0
      %v2433 = vld [vmem:[%s327] sm:$0xf]
      %v2434 = vld [vmem:[%s327 + $0x4] sm:$0xf]
      %v2435 = vld [vmem:[%s327 + $0x8] sm:$0xf]
      %v2436 = vld [vmem:[%s327 + $0xc] sm:$0xf]
      %v2437 = vld [vmem:[%s327 + $0x10] sm:$0xf]
      %v2438 = vld [vmem:[%s327 + $0x14] sm:$0xf]
      %v2439 = vld [vmem:[%s327 + $0x18] sm:$0xf]
      %v2440 = vld [vmem:[%s327 + $0x1c] sm:$0xf]
      %v2441 = vld [vmem:[%s7] sm:$0xf]
      %v2442 = vld [vmem:[%s7 + $0x4] sm:$0xf]
      %v2443 = vld [vmem:[%s7 + $0x8] sm:$0xf]
      %v2444 = vld [vmem:[%s7 + $0xc] sm:$0xf]
      %v2445 = vld [vmem:[%s7 + $0x10] sm:$0xf]
      %v2446 = vld [vmem:[%s7 + $0x14] sm:$0xf]
      %v2447 = vld [vmem:[%s7 + $0x18] sm:$0xf]
      %v2448 = vld [vmem:[%s7 + $0x1c] sm:$0xf]
      %v2449 = vld [vmem:[%s7 + $0x20] sm:$0xf]
      %v2450 = vld [vmem:[%s7 + $0x24] sm:$0xf]
      %v2451 = vld [vmem:[%s7 + $0x28] sm:$0xf]
      %v2452 = vld [vmem:[%s7 + $0x2c] sm:$0xf]
      %v2453 = vld [vmem:[%s7 + $0x30] sm:$0xf]
      %v2454 = vld [vmem:[%s7 + $0x34] sm:$0xf]
      %v2455 = vld [vmem:[%s7 + $0x38] sm:$0xf]
      %v2456 = vld [vmem:[%s7 + $0x3c] sm:$0xf]
      %v2457 = vld [vmem:[%s8] sm:$0x1]
      %v2459 = vlaneseq
      %v2460 = vshrl.u32 %v2459, 7
      %v2461 = vsub.s32 0, %v2460
      %v2462 = vrot.slane %v2457, %v2461
      %v2472 = vunpack.c.l.b16 %v2433
      %v2473 = vunpack.c.l.b16 %v2434
      %v2474 = vunpack.c.l.b16 %v2435
      %v2475 = vunpack.c.l.b16 %v2436
      %v2476 = vunpack.c.l.b16 %v2437
      %v2477 = vunpack.c.l.b16 %v2438
      %v2478 = vunpack.c.l.b16 %v2439
      %v2479 = vunpack.c.l.b16 %v2440
      %v2480 = vpack.c.b16 %v2473, %v2472
      %v2481 = vpack.c.b16 %v2475, %v2474
      %v2482 = vpack.c.b16 %v2477, %v2476
      %v2483 = vpack.c.b16 %v2479, %v2478
      %v2504 = vunpack.c.l.b16 %v2441
      %v2505 = vunpack.c.l.b16 %v2442
      %v2506 = vunpack.c.l.b16 %v2443
      %v2507 = vunpack.c.l.b16 %v2444
      %v2508 = vunpack.c.l.b16 %v2445
      %v2509 = vunpack.c.l.b16 %v2446
      %v2510 = vunpack.c.l.b16 %v2447
      %v2511 = vunpack.c.l.b16 %v2448
      %v2512 = vunpack.c.l.b16 %v2449
      %v2513 = vunpack.c.l.b16 %v2450
      %v2514 = vunpack.c.l.b16 %v2451
      %v2515 = vunpack.c.l.b16 %v2452
      %v2516 = vunpack.c.l.b16 %v2453
      %v2517 = vunpack.c.l.b16 %v2454
      %v2518 = vunpack.c.l.b16 %v2455
      %v2519 = vunpack.c.l.b16 %v2456
      %v2520 = vpack.c.b16 %v2505, %v2504
      %v2521 = vpack.c.b16 %v2507, %v2506
      %v2522 = vpack.c.b16 %v2509, %v2508
      %v2523 = vpack.c.b16 %v2511, %v2510
      %v2524 = vpack.c.b16 %v2513, %v2512
      %v2525 = vpack.c.b16 %v2515, %v2514
      %v2526 = vpack.c.b16 %v2517, %v2516
      %v2527 = vpack.c.b16 %v2519, %v2518
      %2536 = vmatprep.subr.bf16.mxu0 0
      %2537 = vmatpush1.bf16.msra.mxu0 %v2527
      %2538 = vmatprep.subr.bf16.mxu0 0
      %2539 = vmatpush1.bf16.msra.mxu0 %v2526
      %2540 = vmatprep.subr.bf16.mxu0 0
      %2541 = vmatpush1.bf16.msra.mxu0 %v2525
      %2542 = vmatprep.subr.bf16.mxu0 0
      %2543 = vmatpush1.bf16.msra.mxu0 %v2524
      %2544 = vmatprep.subr.bf16.mxu0 0
      %2545 = vmatpush1.bf16.msra.mxu0 %v2523
      %2546 = vmatprep.subr.bf16.mxu0 0
      %2547 = vmatpush1.bf16.msra.mxu0 %v2522
      %2548 = vmatprep.subr.bf16.mxu0 0
      %2549 = vmatpush1.bf16.msra.mxu0 %v2521
      %2550 = vmatprep.subr.bf16.mxu0 0
      %2551 = vmatpush1.bf16.msra.mxu0 %v2520
      %2552 = vmatprep.subr.bf16.mxu0 0
      %2553 = vmatpush2.bf16.msra.mxu0 0
      %2554 = vmatprep.subr.bf16.mxu0 0
      %2555 = vmatpush2.bf16.msra.mxu0 0
      %2556 = vmatprep.subr.bf16.mxu0 0
      %2557 = vmatpush2.bf16.msra.mxu0 0
      %2558 = vmatprep.subr.bf16.mxu0 0
      %2559 = vmatpush2.bf16.msra.mxu0 0
      %2560 = vmatprep.subr.bf16.mxu0 0
      %2561 = vmatpush2.bf16.msra.mxu0 0
      %2562 = vmatprep.subr.bf16.mxu0 0
      %2563 = vmatpush2.bf16.msra.mxu0 0
      %2564 = vmatprep.subr.bf16.mxu0 0
      %2565 = vmatpush2.bf16.msra.mxu0 0
      %2566 = vmatprep.subr.bf16.mxu0 0
      %2567 = vmatpush2.bf16.msra.mxu0 0
      %2568 = vmatprep.mubr.bf16.mxu0 0
      %2569 = vmatmul.mubr.bf16.gmra.mxu0 %v2480
      %v2570 = vpop.f32.mrf.mxu0
      %v2571 = vadd.f32 %v2462, %v2570
      %v2572 = vpop.f32.mrf.mxu0
      %v2573 = vpop.f32.mrf.mxu0
      %v2574 = vadd.f32 %v2462, %v2573
      %v2575 = vpop.f32.mrf.mxu0
      %2576 = vmatprep.mubr.bf16.mxu0 0
      %2577 = vmatmul.mubr.bf16.gmra.mxu0 %v2481
      %v2578 = vpop.f32.mrf.mxu0
      %v2579 = vadd.f32 %v2462, %v2578
      %v2580 = vpop.f32.mrf.mxu0
      %v2581 = vpop.f32.mrf.mxu0
      %v2582 = vadd.f32 %v2462, %v2581
      %v2583 = vpop.f32.mrf.mxu0
      %2584 = vmatprep.mubr.bf16.mxu0 0
      %2585 = vmatmul.mubr.bf16.gmra.mxu0 %v2482
      %v2586 = vpop.f32.mrf.mxu0
      %v2587 = vadd.f32 %v2462, %v2586
      %v2588 = vpop.f32.mrf.mxu0
      %v2589 = vpop.f32.mrf.mxu0
      %v2590 = vadd.f32 %v2462, %v2589
      %v2591 = vpop.f32.mrf.mxu0
      %2592 = vmatprep.mubr.bf16.mxu0 0
      %2593 = vmatmul.mubr.bf16.gmra.mxu0 %v2483
      %v2594 = vpop.f32.mrf.mxu0
      %v2595 = vadd.f32 %v2462, %v2594
      %v2596 = vpop.f32.mrf.mxu0
      %v2597 = vpop.f32.mrf.mxu0
      %v2598 = vadd.f32 %v2462, %v2597
      %v2599 = vpop.f32.mrf.mxu0
      %2600 = vdwg.mxu0
      %v2601 = vadd.f32 %v2403, %v2571
      %v2602 = vadd.f32 %v2406, %v2574
      %v2603 = vadd.f32 %v2411, %v2579
      %v2604 = vadd.f32 %v2414, %v2582
      %v2605 = vadd.f32 %v2419, %v2587
      %v2606 = vadd.f32 %v2422, %v2590
      %v2607 = vadd.f32 %v2427, %v2595
      %v2608 = vadd.f32 %v2430, %v2598
      %v2609 = vmax.f32 %v2601, 0.0
      %v2610 = vmax.f32 %v2602, 0.0
      %v2611 = vmax.f32 %v2603, 0.0
      %v2612 = vmax.f32 %v2604, 0.0
      %v2613 = vmax.f32 %v2605, 0.0
      %v2614 = vmax.f32 %v2606, 0.0
      %v2615 = vmax.f32 %v2607, 0.0
      %v2616 = vmax.f32 %v2608, 0.0
      %2617 = vst [vmem:[%s332] sm:$0xff] %v2609
      %2618 = vst [vmem:[%s332 + $0x8] sm:$0xff] %v2610
      %2619 = vst [vmem:[%s332 + $0x10] sm:$0xff] %v2611
      %2620 = vst [vmem:[%s332 + $0x18] sm:$0xff] %v2612
      %2621 = vst [vmem:[%s332 + $0x20] sm:$0xff] %v2613
      %2622 = vst [vmem:[%s332 + $0x28] sm:$0xff] %v2614
      %2623 = vst [vmem:[%s332 + $0x30] sm:$0xff] %v2615
      %2624 = vst [vmem:[%s332 + $0x38] sm:$0xff] %v2616
      %p2625 = scmp.lt.s32.totalorder %s20, 1
      %s2626 = scalar_select %p2625, %s20, 1
      %s2627 = smul.addr %s2626, 8
      %s2628 = smul.addr %s2627, 8
      %s2629 = scalar_lea.vmem %s9, %s2628
      // Predicated region
      $region57: #{bottleneck_forward.1} parent=55 // pred_check
        %p2630 = pneg %p232
      $region58: #{bottleneck_forward.1} parent=55 // pred_check_branch
        %2632 = sbr.rel (%p2630) target = $region60
      $region59: #{bottleneck_forward.1} parent=55 // pred_region
        _
      $region60: #{bottleneck_forward.1} parent=55 // pred_fallthru
        _
    $region56: #{bottleneck_forward.1} parent=5 // pred_fallthru
      _
    %p2633 = scmp.le.s32.totalorder 2, %s15
    // Predicated region
    $region61: #{bottleneck_forward.1} parent=5 // pred_check
      %p2634 = pneg %p2633
    $region62: #{bottleneck_forward.1} parent=5 // pred_check_branch
      %2636 = sbr.rel (%p2634) target = $region64
    $region63: #{bottleneck_forward.1} parent=5 // pred_region
      %s2637 = ssub.s32 %s15, 2
      // Predicated region
      $region65: #{bottleneck_forward.1} parent=63 // pred_check
        %p2638 = pneg %p238
      $region66: #{bottleneck_forward.1} parent=63 // pred_check_branch
        %2640 = sbr.rel (%p2638) target = $region68
      $region67: #{bottleneck_forward.1} parent=63 // pred_region
        %p2641 = scmp.lt.s32.totalorder %s21, 1
        %s2642 = scalar_select %p2641, %s21, 1
        %s2643 = smul.addr %s2642, 8
        %s2644 = smul.addr %s2643, 8
        %s2645 = scalar_lea.vmem %s9, %s2644
      $region68: #{bottleneck_forward.1} parent=63 // pred_fallthru
        _
    $region64: #{bottleneck_forward.1} parent=5 // pred_fallthru
      _
  $region6: #{bottleneck_forward.1} parent=0 // loop_footer
    %s19 = sadd.s32 1, %s15
  $region7: #{bottleneck_forward.1} parent=0 // loop_footer_branch
    %14 = sbr.rel target = $region3
  $region8: #{bottleneck_forward.1} parent=0 // loop_exit
    _

</llo_original>
